<compile_context>
chip_gen: v5e
topology: v5e:2x2
jax: 0.10.0
libtpu: 0.0.40
codegen_flags: <defaults>
</compile_context>

<pallas_src>
import functools
import math

import jax
import jax.numpy as jnp
from jax.experimental import pallas as pl
from jax.experimental.pallas import tpu as pltpu


# Fixed DQNSolver conv architecture: (cout, kernel, stride)
CONV_CFG = ((32, 8, 4), (64, 4, 2), (64, 3, 1))


# ----------------------------------------------------------------------------
# Small helpers
# ----------------------------------------------------------------------------
def _round_up(x, m):
    return (x + m - 1) // m * m


def _choose_tm(m, tm_max=256):
    """Pick the M-tile and padded M. Tiles are multiples of 16 (bf16 sublane
    packing) and at most tm_max so blocks double-buffer comfortably in VMEM
    (sized for v7x's 64 MiB with large headroom)."""
    if m >= tm_max:
        return tm_max, _round_up(m, tm_max)
    mp = _round_up(m, 16)
    return mp, mp


# ----------------------------------------------------------------------------
# Pallas kernel: tiled matmul + bias + optional ReLU (conv hot path)
# ----------------------------------------------------------------------------
def _matmul_bias_act_kernel(x_ref, w_ref, b_ref, o_ref, *, relu):
    # x: (TM, Kp) bf16, w: (Kp, Np) bf16, b: (1, Np) f32, o: (TM, Np) bf16/f32
    acc = jnp.dot(x_ref[...], w_ref[...], preferred_element_type=jnp.float32)
    acc = acc + b_ref[...]
    if relu:
        acc = jnp.maximum(acc, 0.0)
    o_ref[...] = acc.astype(o_ref.dtype)


def matmul_bias_act(patches, w_p, b_p, cout, relu=True,
                    out_dtype=jnp.bfloat16, tm_max=256):
    """out = act(patches @ w_p + b_p). w_p/b_p are pre-padded (Kp, Np)/(1, Np)
    bf16/f32 prepared weights. M is tiled over a parallel grid axis; the
    un-padded (M, cout) slice is returned."""
    M, K = patches.shape
    Kp, Np = w_p.shape
    TM, Mp = _choose_tm(M, tm_max)

    x = patches.astype(jnp.bfloat16)
    if Mp != M or Kp != K:
        x = jnp.pad(x, ((0, Mp - M), (0, Kp - K)))

    cost = pl.CostEstimate(
        flops=int(2 * Mp * Kp * Np),
        transcendentals=0,
        bytes_accessed=int(x.size * 2 + w_p.size * 2 + b_p.size * 4
                           + Mp * Np * jnp.dtype(out_dtype).itemsize),
    )
    out = pl.pallas_call(
        functools.partial(_matmul_bias_act_kernel, relu=relu),
        out_shape=jax.ShapeDtypeStruct((Mp, Np), out_dtype),
        grid_spec=pltpu.PrefetchScalarGridSpec(
            num_scalar_prefetch=0,
            grid=(Mp // TM,),
            in_specs=[
                pl.BlockSpec((TM, Kp), lambda i: (i, 0)),   # patch row-tile
                pl.BlockSpec((Kp, Np), lambda i: (0, 0)),   # weights resident
                pl.BlockSpec((1, Np), lambda i: (0, 0)),    # bias resident
            ],
            out_specs=pl.BlockSpec((TM, Np), lambda i: (i, 0)),
        ),
        compiler_params=pltpu.CompilerParams(
            dimension_semantics=("parallel",)),
        cost_estimate=cost,
    )(x, w_p, b_p)
    return out[:M, :cout]


# ----------------------------------------------------------------------------
# Pallas kernel: fused NoisyLinear(fc1) + ReLU + NoisyLinear(fc2)
#   y = x @ mu^T + ((x * eps_i) @ sigma^T) * eps_j + (b_mu + b_sigma * eps_j)
# (factorized noise: the (out, in) noisy weight is never built)
# ----------------------------------------------------------------------------
def _fused_noisy_fc_kernel(x_ref, mu1_ref, sig1_ref, ei1_ref, ej1_ref, b1_ref,
                           mu2_ref, sig2_ref, ei2_ref, ej2_ref, b2_ref, o_ref):
    x = x_ref[...]                                                # bf16 (TM, K1p)
    h = jnp.dot(x, mu1_ref[...], preferred_element_type=jnp.float32)
    h = h + jnp.dot(x * ei1_ref[...], sig1_ref[...],
                    preferred_element_type=jnp.float32) * ej1_ref[...]
    h = h + b1_ref[...]
    h = jnp.maximum(h, 0.0)                                       # ReLU between fc1/fc2
    hb = h.astype(jnp.bfloat16)
    q = jnp.dot(hb, mu2_ref[...], preferred_element_type=jnp.float32)
    q = q + jnp.dot(hb * ei2_ref[...], sig2_ref[...],
                    preferred_element_type=jnp.float32) * ej2_ref[...]
    q = q + b2_ref[...]
    o_ref[...] = q.astype(o_ref.dtype)


def fused_noisy_fc(flat, fc1p, fc2p, eps_i1_hwc, eps_j1, eps_i2, eps_j2,
                   n_actions, tm_max=256):
    """flat: (N, H*W*C) NHWC-flattened conv features (bf16). fc1p/fc2p hold
    pre-transposed, pre-padded bf16 weight matrices plus raw f32 bias mu/sigma
    (noisy bias is recomputed per call from fresh eps_j)."""
    M, K1 = flat.shape
    K1p, mid = fc1p["mu_t"].shape
    N2p = fc2p["mu_t"].shape[1]
    TM, Mp = _choose_tm(M, tm_max)

    x = flat.astype(jnp.bfloat16)
    if Mp != M or K1p != K1:
        x = jnp.pad(x, ((0, Mp - M), (0, K1p - K1)))

    ei1 = eps_i1_hwc.astype(jnp.bfloat16)
    if K1p != K1:
        ei1 = jnp.pad(ei1, (0, K1p - K1))
    ei1 = ei1.reshape(1, K1p)
    ej1 = eps_j1.astype(jnp.float32).reshape(1, mid)
    b1 = (fc1p["b_mu"] + fc1p["b_sigma"] * eps_j1).astype(jnp.float32).reshape(1, mid)

    ei2 = eps_i2.astype(jnp.bfloat16).reshape(1, mid)
    ej2_p = jnp.pad(eps_j2.astype(jnp.float32), (0, N2p - n_actions))
    ej2 = ej2_p.reshape(1, N2p)
    b2 = (fc2p["b_mu_p"] + fc2p["b_sigma_p"] * ej2_p).reshape(1, N2p)

    row = lambda i: (i, 0)
    full = lambda i: (0, 0)

    out = pl.pallas_call(
        _fused_noisy_fc_kernel,
        out_shape=jax.ShapeDtypeStruct((Mp, N2p), jnp.float32),
        grid_spec=pltpu.PrefetchScalarGridSpec(
            num_scalar_prefetch=0,
            grid=(Mp // TM,),
            in_specs=[
                pl.BlockSpec((TM, K1p), row),     # x row-tile
                pl.BlockSpec((K1p, mid), full),   # mu1^T
                pl.BlockSpec((K1p, mid), full),   # sigma1^T
                pl.BlockSpec((1, K1p), full),     # eps_i1
                pl.BlockSpec((1, mid), full),     # eps_j1
                pl.BlockSpec((1, mid), full),     # noisy bias 1
                pl.BlockSpec((mid, N2p), full),   # mu2^T (lane-padded)
                pl.BlockSpec((mid, N2p), full),   # sigma2^T (lane-padded)
                pl.BlockSpec((1, mid), full),     # eps_i2
                pl.BlockSpec((1, N2p), full),     # eps_j2 (padded)
                pl.BlockSpec((1, N2p), full),     # noisy bias 2 (padded)
            ],
            out_specs=pl.BlockSpec((TM, N2p), row),
        ),
        compiler_params=pltpu.CompilerParams(
            dimension_semantics=("parallel",)),
    )(x, fc1p["mu_t"], fc1p["sig_t"], ei1, ej1, b1,
      fc2p["mu_t"], fc2p["sig_t"], ei2, ej2, b2)
    return out[:M, :n_actions]


# ----------------------------------------------------------------------------
# Conv via NHWC im2col (XLA glue) + Pallas matmul kernel
# ----------------------------------------------------------------------------
def im2col_nhwc(x, kh, kw, stride):
    """NHWC im2col: rows = (n, oh, ow), columns ordered (kh, kw, C)."""
    # TODO(synk): fold the patch extraction into the conv kernel (manual DMA /
    # strided in-kernel window loads) to remove the kh*kw HBM blow-up of the
    # patch tensor; kept as XLA glue here for compile robustness.
    N, H, W, C = x.shape
    OH = (H - kh) // stride + 1
    OW = (W - kw) // stride + 1
    cols = []
    for i in range(kh):
        for j in range(kw):
            cols.append(x[:, i:i + (OH - 1) * stride + 1:stride,
                          j:j + (OW - 1) * stride + 1:stride, :])
    patches = jnp.concatenate(cols, axis=-1)          # (N, OH, OW, kh*kw*C)
    return patches.reshape(N * OH * OW, kh * kw * C), OH, OW


def conv2d_relu_nhwc(x_nhwc, wmat_p, bias_p, k, stride, cout):
    """x_nhwc: (N, H, W, Cin) bf16. wmat_p/bias_p are prepared (padded, bf16)
    weight matrix / f32 bias row. Returns NHWC bf16 (no layout transpose)."""
    N = x_nhwc.shape[0]
    patches, OH, OW = im2col_nhwc(x_nhwc, k, k, stride)
    out = matmul_bias_act(patches, wmat_p, bias_p, cout, relu=True,
                          out_dtype=jnp.bfloat16)      # (N*OH*OW, cout)
    return out.reshape(N, OH, OW, cout)                # already NHWC


# ----------------------------------------------------------------------------
# Deterministic parameter / noise construction (mirrors module __init__)
# ----------------------------------------------------------------------------
def init_conv(key, cout, cin, k):
    kw_, kb_ = jax.random.split(key)
    bound = 1.0 / math.sqrt(cin * k * k)
    w = jax.random.uniform(kw_, (cout, cin, k, k), jnp.float32, -bound, bound)
    b = jax.random.uniform(kb_, (cout,), jnp.float32, -bound, bound)
    return w, b


def init_noisy(key, in_f, out_f, sigma_init=0.5):
    kw_, kb_ = jax.random.split(key)
    bound = 1.0 / math.sqrt(in_f)
    return {
        "weight_mu": jax.random.uniform(kw_, (out_f, in_f), jnp.float32, -bound, bound),
        "weight_sigma": jnp.full((out_f, in_f), sigma_init / math.sqrt(in_f), jnp.float32),
        "bias_mu": jax.random.uniform(kb_, (out_f,), jnp.float32, -bound, bound),
        "bias_sigma": jnp.full((out_f,), sigma_init / math.sqrt(out_f), jnp.float32),
    }


def scale_noise(key, size):
    x = jax.random.normal(key, (size,), jnp.float32)
    return jnp.sign(x) * jnp.sqrt(jnp.abs(x))


def make_dqn_params(key, input_shape, n_actions):
    c_in, H, W = input_shape
    k1, k2, k3, k4, k5 = jax.random.split(key, 5)
    c1_w, c1_b = init_conv(k1, 32, c_in, 8)
    c2_w, c2_b = init_conv(k2, 64, 32, 4)
    c3_w, c3_b = init_conv(k3, 64, 64, 3)
    h, w = H, W
    for _, k, s in CONV_CFG:
        h = (h - k) // s + 1
        w = (w - k) // s + 1
    conv_out = 64 * h * w
    return {
        "c1_w": c1_w, "c1_b": c1_b,
        "c2_w": c2_w, "c2_b": c2_b,
        "c3_w": c3_w, "c3_b": c3_b,
        "fc1": init_noisy(k4, conv_out, 512),
        "fc2": init_noisy(k5, 512, n_actions),
    }, conv_out


# ----------------------------------------------------------------------------
# One-time weight preparation: transpose / permute / pad / bf16-cast hoisted
# out of the per-step forward.
# ----------------------------------------------------------------------------
def prepare_params(params, input_shape):
    c_in, H, W = input_shape
    conv_prep = []
    ch, hh, ww = c_in, H, W
    for idx, (cout, k, stride) in enumerate(CONV_CFG):
        w_raw = params[f"c{idx + 1}_w"]
        b_raw = params[f"c{idx + 1}_b"]
        K = k * k * ch
        Kp = _round_up(K, 128)
        Np = _round_up(cout, 128)
        # (Cout, Cin, KH, KW) -> columns ordered (kh, kw, cin) to match NHWC im2col.
        wmat = w_raw.transpose(0, 2, 3, 1).reshape(cout, K).T
        wmat = jnp.pad(wmat.astype(jnp.bfloat16), ((0, Kp - K), (0, Np - cout)))
        bias = jnp.pad(b_raw.astype(jnp.float32), (0, Np - cout)).reshape(1, Np)
        conv_prep.append({"w": wmat, "b": bias})
        ch = cout
        hh = (hh - k) // stride + 1
        ww = (ww - k) // stride + 1
    H3, W3, C3 = hh, ww, ch
    K1 = H3 * W3 * C3

    fc1 = params["fc1"]
    fc2 = params["fc2"]
    mid = fc1["weight_mu"].shape[0]
    n_act = fc2["weight_mu"].shape[0]
    K1p = _round_up(K1, 128)
    N2p = _round_up(n_act, 128)

    def perm_cols(wm):  # PyTorch NCHW .view flatten (C,H,W) -> NHWC flatten (H,W,C)
        return wm.reshape(mid, C3, H3, W3).transpose(0, 2, 3, 1).reshape(mid, K1)

    mu1_t = jnp.pad(perm_cols(fc1["weight_mu"]).T.astype(jnp.bfloat16),
                    ((0, K1p - K1), (0, 0)))
    sig1_t = jnp.pad(perm_cols(fc1["weight_sigma"]).T.astype(jnp.bfloat16),
                     ((0, K1p - K1), (0, 0)))
    mu2_t = jnp.pad(fc2["weight_mu"].T.astype(jnp.bfloat16),
                    ((0, 0), (0, N2p - n_act)))
    sig2_t = jnp.pad(fc2["weight_sigma"].T.astype(jnp.bfloat16),
                     ((0, 0), (0, N2p - n_act)))

    return {
        "conv": conv_prep,
        "fc1": {"mu_t": mu1_t, "sig_t": sig1_t,
                "b_mu": fc1["bias_mu"].astype(jnp.float32),
                "b_sigma": fc1["bias_sigma"].astype(jnp.float32)},
        "fc2": {"mu_t": mu2_t, "sig_t": sig2_t,
                "b_mu_p": jnp.pad(fc2["bias_mu"].astype(jnp.float32), (0, N2p - n_act)),
                "b_sigma_p": jnp.pad(fc2["bias_sigma"].astype(jnp.float32), (0, N2p - n_act))},
    }


# ----------------------------------------------------------------------------
# Forward pass (DQNSolver, training mode: noise resampled per call)
# ----------------------------------------------------------------------------
@functools.partial(jax.jit, static_argnames=("n_actions",))
def dqn_forward(prep, x_nchw, noise_key, *, n_actions):
    # Single NCHW -> NHWC transpose + one cast to bf16 for the whole conv stack.
    x = jnp.transpose(x_nchw, (0, 2, 3, 1)).astype(jnp.bfloat16)
    for layer, (cout, k, stride) in zip(prep["conv"], CONV_CFG):
        x = conv2d_relu_nhwc(x, layer["w"], layer["b"], k, stride, cout)
    N, H3, W3, C3 = x.shape
    flat = x.reshape(N, H3 * W3 * C3)                  # NHWC flatten (fc1 cols pre-permuted)

    mid = prep["fc1"]["mu_t"].shape[1]
    in1 = H3 * W3 * C3

    # NoisyLinear factorized noise (torch.randn -> jax.random.normal).
    ks = jax.random.split(noise_key, 4)
    eps_i1 = scale_noise(ks[0], in1)
    eps_j1 = scale_noise(ks[1], mid)
    eps_i2 = scale_noise(ks[2], mid)
    eps_j2 = scale_noise(ks[3], n_actions)

    # eps_i1 is in fc1's native CHW flatten order; permute once (tiny vector)
    # to HWC to match the pre-permuted fc1 weight columns.
    eps_i1_hwc = eps_i1.reshape(C3, H3, W3).transpose(1, 2, 0).reshape(-1)

    return fused_noisy_fc(flat, prep["fc1"], prep["fc2"],
                          eps_i1_hwc, eps_j1, eps_i2, eps_j2, n_actions)


# ----------------------------------------------------------------------------
if __name__ == "__main__":
    # 44 -> (44-8)/4+1 = 10 -> (10-4)/2+1 = 4 -> (4-3)+1 = 2  => conv_out = 64*2*2 = 256
    input_shape = (4, 44, 44)
    n_actions = 6
    batch = 2

    root = jax.random.PRNGKey(0)
    k_param, k_x, k_noise = jax.random.split(root, 3)

    params, conv_out = make_dqn_params(k_param, input_shape, n_actions)
    prep = prepare_params(params, input_shape)   # one-time weight prep (outside jit)
    x = jax.random.normal(k_x, (batch,) + input_shape, jnp.float32)

    q = dqn_forward(prep, x, k_noise, n_actions=n_actions)
    q = jax.block_until_ready(q)
    assert q.shape == (batch, n_actions), q.shape
    assert q.dtype == jnp.float32
    print("KERNEL_OK")
</pallas_src>

<mosaic_0001>
module attributes {stable_mosaic.version = 11 : i64} {
  func.func @_matmul_bias_act_kernel(%arg0: i32, %arg1: memref<208x256xbf16, #tpu.memory_space<vmem>>, %arg2: memref<256x128xbf16, #tpu.memory_space<vmem>>, %arg3: memref<1x128xf32, #tpu.memory_space<vmem>>, %arg4: memref<208x128xbf16, #tpu.memory_space<vmem>>) attributes {dimension_semantics = [#tpu.dimension_semantics<parallel>], iteration_bounds = array<i64: 1>, scalar_prefetch = 0 : i64, scratch_operands = 0 : i64, tpu.core_type = #tpu.core_type<tc>, window_params = [{transform_indices = @transform_0, window_bounds = array<i64: 208, 256>}, {pipeline_mode = #tpu.pipeline_mode<synchronous>, transform_indices = @transform_1, window_bounds = array<i64: 256, 128>}, {pipeline_mode = #tpu.pipeline_mode<synchronous>, transform_indices = @transform_2, window_bounds = array<i64: 1, 128>}, {transform_indices = @transform_3, window_bounds = array<i64: 208, 128>}]} {
    %c0 = arith.constant 0 : index
    %c0_0 = arith.constant 0 : index
    %0 = vector.load %arg1[%c0, %c0_0] : memref<208x256xbf16, #tpu.memory_space<vmem>>, vector<208x256xbf16>
    %c0_1 = arith.constant 0 : index
    %c0_2 = arith.constant 0 : index
    %1 = vector.load %arg2[%c0_1, %c0_2] : memref<256x128xbf16, #tpu.memory_space<vmem>>, vector<256x128xbf16>
    %cst = arith.constant dense<0.000000e+00> : vector<208x128xf32>
    %2 = tpu.matmul %0, %1, %cst {dimension_numbers = #tpu.dot_dimension_numbers<[1], [0], [0], [1], [0, 0, 1, 1], [], []>} : vector<208x256xbf16>, vector<256x128xbf16>, vector<208x128xf32> -> vector<208x128xf32>
    %c0_3 = arith.constant 0 : index
    %c0_4 = arith.constant 0 : index
    %3 = vector.load %arg3[%c0_3, %c0_4] : memref<1x128xf32, #tpu.memory_space<vmem>>, vector<1x128xf32>
    %4 = vector.broadcast %3 : vector<1x128xf32> to vector<208x128xf32>
    %5 = arith.addf %2, %4 : vector<208x128xf32>
    %cst_5 = arith.constant 0.000000e+00 : f32
    %6 = vector.broadcast %cst_5 : f32 to vector<208x128xf32>
    %7 = arith.maximumf %5, %6 : vector<208x128xf32>
    %8 = arith.truncf %7 : vector<208x128xf32> to vector<208x128xbf16>
    %c0_6 = arith.constant 0 : index
    %c0_7 = arith.constant 0 : index
    %9 = vector.load %arg4[%c0_6, %c0_7] : memref<208x128xbf16, #tpu.memory_space<vmem>>, vector<208x128xbf16>
    tpu.vector_store %arg4[%c0_6, %c0_7], %8 {strides = array<i32>} : memref<208x128xbf16, #tpu.memory_space<vmem>>, vector<208x128xbf16>,
    return
  }
  func.func @transform_0(%arg0: i32) -> (i32, i32) {
    %c0_i32 = arith.constant 0 : i32
    %c0_i32_0 = arith.constant 0 : i32
    return %arg0, %c0_i32 : i32, i32
  }
  func.func @transform_1(%arg0: i32) -> (i32, i32) {
    %c0_i32 = arith.constant 0 : i32
    %c0_i32_0 = arith.constant 0 : i32
    %c0_i32_1 = arith.constant 0 : i32
    return %c0_i32, %c0_i32_0 : i32, i32
  }
  func.func @transform_2(%arg0: i32) -> (i32, i32) {
    %c0_i32 = arith.constant 0 : i32
    %c0_i32_0 = arith.constant 0 : i32
    %c0_i32_1 = arith.constant 0 : i32
    return %c0_i32, %c0_i32_0 : i32, i32
  }
  func.func @transform_3(%arg0: i32) -> (i32, i32) {
    %c0_i32 = arith.constant 0 : i32
    %c0_i32_0 = arith.constant 0 : i32
    return %arg0, %c0_i32 : i32, i32
  }
}

module attributes {stable_mosaic.version = 11 : i64} {
  func.func @_matmul_bias_act_kernel(%arg0: i32, %arg1: memref<32x512xbf16, #tpu.memory_space<vmem>>, %arg2: memref<512x128xbf16, #tpu.memory_space<vmem>>, %arg3: memref<1x128xf32, #tpu.memory_space<vmem>>, %arg4: memref<32x128xbf16, #tpu.memory_space<vmem>>) attributes {dimension_semantics = [#tpu.dimension_semantics<parallel>], iteration_bounds = array<i64: 1>, scalar_prefetch = 0 : i64, scratch_operands = 0 : i64, tpu.core_type = #tpu.core_type<tc>, window_params = [{transform_indices = @transform_0, window_bounds = array<i64: 32, 512>}, {pipeline_mode = #tpu.pipeline_mode<synchronous>, transform_indices = @transform_1, window_bounds = array<i64: 512, 128>}, {pipeline_mode = #tpu.pipeline_mode<synchronous>, transform_indices = @transform_2, window_bounds = array<i64: 1, 128>}, {transform_indices = @transform_3, window_bounds = array<i64: 32, 128>}]} {
    %c0 = arith.constant 0 : index
    %c0_0 = arith.constant 0 : index
    %0 = vector.load %arg1[%c0, %c0_0] : memref<32x512xbf16, #tpu.memory_space<vmem>>, vector<32x512xbf16>
    %c0_1 = arith.constant 0 : index
    %c0_2 = arith.constant 0 : index
    %1 = vector.load %arg2[%c0_1, %c0_2] : memref<512x128xbf16, #tpu.memory_space<vmem>>, vector<512x128xbf16>
    %cst = arith.constant dense<0.000000e+00> : vector<32x128xf32>
    %2 = tpu.matmul %0, %1, %cst {dimension_numbers = #tpu.dot_dimension_numbers<[1], [0], [0], [1], [0, 0, 1, 1], [], []>} : vector<32x512xbf16>, vector<512x128xbf16>, vector<32x128xf32> -> vector<32x128xf32>
    %c0_3 = arith.constant 0 : index
    %c0_4 = arith.constant 0 : index
    %3 = vector.load %arg3[%c0_3, %c0_4] : memref<1x128xf32, #tpu.memory_space<vmem>>, vector<1x128xf32>
    %4 = vector.broadcast %3 : vector<1x128xf32> to vector<32x128xf32>
    %5 = arith.addf %2, %4 : vector<32x128xf32>
    %cst_5 = arith.constant 0.000000e+00 : f32
    %6 = vector.broadcast %cst_5 : f32 to vector<32x128xf32>
    %7 = arith.maximumf %5, %6 : vector<32x128xf32>
    %8 = arith.truncf %7 : vector<32x128xf32> to vector<32x128xbf16>
    %c0_6 = arith.constant 0 : index
    %c0_7 = arith.constant 0 : index
    %9 = vector.load %arg4[%c0_6, %c0_7] : memref<32x128xbf16, #tpu.memory_space<vmem>>, vector<32x128xbf16>
    tpu.vector_store %arg4[%c0_6, %c0_7], %8 {strides = array<i32>} : memref<32x128xbf16, #tpu.memory_space<vmem>>, vector<32x128xbf16>,
    return
  }
  func.func @transform_0(%arg0: i32) -> (i32, i32) {
    %c0_i32 = arith.constant 0 : i32
    %c0_i32_0 = arith.constant 0 : i32
    return %arg0, %c0_i32 : i32, i32
  }
  func.func @transform_1(%arg0: i32) -> (i32, i32) {
    %c0_i32 = arith.constant 0 : i32
    %c0_i32_0 = arith.constant 0 : i32
    %c0_i32_1 = arith.constant 0 : i32
    return %c0_i32, %c0_i32_0 : i32, i32
  }
  func.func @transform_2(%arg0: i32) -> (i32, i32) {
    %c0_i32 = arith.constant 0 : i32
    %c0_i32_0 = arith.constant 0 : i32
    %c0_i32_1 = arith.constant 0 : i32
    return %c0_i32, %c0_i32_0 : i32, i32
  }
  func.func @transform_3(%arg0: i32) -> (i32, i32) {
    %c0_i32 = arith.constant 0 : i32
    %c0_i32_0 = arith.constant 0 : i32
    return %arg0, %c0_i32 : i32, i32
  }
}

module attributes {stable_mosaic.version = 11 : i64} {
  func.func @_matmul_bias_act_kernel(%arg0: i32, %arg1: memref<16x640xbf16, #tpu.memory_space<vmem>>, %arg2: memref<640x128xbf16, #tpu.memory_space<vmem>>, %arg3: memref<1x128xf32, #tpu.memory_space<vmem>>, %arg4: memref<16x128xbf16, #tpu.memory_space<vmem>>) attributes {dimension_semantics = [#tpu.dimension_semantics<parallel>], iteration_bounds = array<i64: 1>, scalar_prefetch = 0 : i64, scratch_operands = 0 : i64, tpu.core_type = #tpu.core_type<tc>, window_params = [{transform_indices = @transform_0, window_bounds = array<i64: 16, 640>}, {pipeline_mode = #tpu.pipeline_mode<synchronous>, transform_indices = @transform_1, window_bounds = array<i64: 640, 128>}, {pipeline_mode = #tpu.pipeline_mode<synchronous>, transform_indices = @transform_2, window_bounds = array<i64: 1, 128>}, {transform_indices = @transform_3, window_bounds = array<i64: 16, 128>}]} {
    %c0 = arith.constant 0 : index
    %c0_0 = arith.constant 0 : index
    %0 = vector.load %arg1[%c0, %c0_0] : memref<16x640xbf16, #tpu.memory_space<vmem>>, vector<16x640xbf16>
    %c0_1 = arith.constant 0 : index
    %c0_2 = arith.constant 0 : index
    %1 = vector.load %arg2[%c0_1, %c0_2] : memref<640x128xbf16, #tpu.memory_space<vmem>>, vector<640x128xbf16>
    %cst = arith.constant dense<0.000000e+00> : vector<16x128xf32>
    %2 = tpu.matmul %0, %1, %cst {dimension_numbers = #tpu.dot_dimension_numbers<[1], [0], [0], [1], [0, 0, 1, 1], [], []>} : vector<16x640xbf16>, vector<640x128xbf16>, vector<16x128xf32> -> vector<16x128xf32>
    %c0_3 = arith.constant 0 : index
    %c0_4 = arith.constant 0 : index
    %3 = vector.load %arg3[%c0_3, %c0_4] : memref<1x128xf32, #tpu.memory_space<vmem>>, vector<1x128xf32>
    %4 = vector.broadcast %3 : vector<1x128xf32> to vector<16x128xf32>
    %5 = arith.addf %2, %4 : vector<16x128xf32>
    %cst_5 = arith.constant 0.000000e+00 : f32
    %6 = vector.broadcast %cst_5 : f32 to vector<16x128xf32>
    %7 = arith.maximumf %5, %6 : vector<16x128xf32>
    %8 = arith.truncf %7 : vector<16x128xf32> to vector<16x128xbf16>
    %c0_6 = arith.constant 0 : index
    %c0_7 = arith.constant 0 : index
    %9 = vector.load %arg4[%c0_6, %c0_7] : memref<16x128xbf16, #tpu.memory_space<vmem>>, vector<16x128xbf16>
    tpu.vector_store %arg4[%c0_6, %c0_7], %8 {strides = array<i32>} : memref<16x128xbf16, #tpu.memory_space<vmem>>, vector<16x128xbf16>,
    return
  }
  func.func @transform_0(%arg0: i32) -> (i32, i32) {
    %c0_i32 = arith.constant 0 : i32
    %c0_i32_0 = arith.constant 0 : i32
    return %arg0, %c0_i32 : i32, i32
  }
  func.func @transform_1(%arg0: i32) -> (i32, i32) {
    %c0_i32 = arith.constant 0 : i32
    %c0_i32_0 = arith.constant 0 : i32
    %c0_i32_1 = arith.constant 0 : i32
    return %c0_i32, %c0_i32_0 : i32, i32
  }
  func.func @transform_2(%arg0: i32) -> (i32, i32) {
    %c0_i32 = arith.constant 0 : i32
    %c0_i32_0 = arith.constant 0 : i32
    %c0_i32_1 = arith.constant 0 : i32
    return %c0_i32, %c0_i32_0 : i32, i32
  }
  func.func @transform_3(%arg0: i32) -> (i32, i32) {
    %c0_i32 = arith.constant 0 : i32
    %c0_i32_0 = arith.constant 0 : i32
    return %arg0, %c0_i32 : i32, i32
  }
}

module attributes {stable_mosaic.version = 11 : i64} {
  func.func @_fused_noisy_fc_kernel(%arg0: i32, %arg1: memref<16x256xbf16, #tpu.memory_space<vmem>>, %arg2: memref<256x512xbf16, #tpu.memory_space<vmem>>, %arg3: memref<256x512xbf16, #tpu.memory_space<vmem>>, %arg4: memref<1x256xbf16, #tpu.memory_space<vmem>>, %arg5: memref<1x512xf32, #tpu.memory_space<vmem>>, %arg6: memref<1x512xf32, #tpu.memory_space<vmem>>, %arg7: memref<512x128xbf16, #tpu.memory_space<vmem>>, %arg8: memref<512x128xbf16, #tpu.memory_space<vmem>>, %arg9: memref<1x512xbf16, #tpu.memory_space<vmem>>, %arg10: memref<1x128xf32, #tpu.memory_space<vmem>>, %arg11: memref<1x128xf32, #tpu.memory_space<vmem>>, %arg12: memref<16x128xf32, #tpu.memory_space<vmem>>) attributes {dimension_semantics = [#tpu.dimension_semantics<parallel>], iteration_bounds = array<i64: 1>, scalar_prefetch = 0 : i64, scratch_operands = 0 : i64, tpu.core_type = #tpu.core_type<tc>, window_params = [{transform_indices = @transform_0, window_bounds = array<i64: 16, 256>}, {pipeline_mode = #tpu.pipeline_mode<synchronous>, transform_indices = @transform_1, window_bounds = array<i64: 256, 512>}, {pipeline_mode = #tpu.pipeline_mode<synchronous>, transform_indices = @transform_2, window_bounds = array<i64: 256, 512>}, {pipeline_mode = #tpu.pipeline_mode<synchronous>, transform_indices = @transform_3, window_bounds = array<i64: 1, 256>}, {pipeline_mode = #tpu.pipeline_mode<synchronous>, transform_indices = @transform_4, window_bounds = array<i64: 1, 512>}, {pipeline_mode = #tpu.pipeline_mode<synchronous>, transform_indices = @transform_5, window_bounds = array<i64: 1, 512>}, {pipeline_mode = #tpu.pipeline_mode<synchronous>, transform_indices = @transform_6, window_bounds = array<i64: 512, 128>}, {pipeline_mode = #tpu.pipeline_mode<synchronous>, transform_indices = @transform_7, window_bounds = array<i64: 512, 128>}, {pipeline_mode = #tpu.pipeline_mode<synchronous>, transform_indices = @transform_8, window_bounds = array<i64: 1, 512>}, {pipeline_mode = #tpu.pipeline_mode<synchronous>, transform_indices = @transform_9, window_bounds = array<i64: 1, 128>}, {pipeline_mode = #tpu.pipeline_mode<synchronous>, transform_indices = @transform_10, window_bounds = array<i64: 1, 128>}, {transform_indices = @transform_11, window_bounds = array<i64: 16, 128>}]} {
    %c0 = arith.constant 0 : index
    %c0_0 = arith.constant 0 : index
    %0 = vector.load %arg1[%c0, %c0_0] : memref<16x256xbf16, #tpu.memory_space<vmem>>, vector<16x256xbf16>
    %c0_1 = arith.constant 0 : index
    %c0_2 = arith.constant 0 : index
    %1 = vector.load %arg2[%c0_1, %c0_2] : memref<256x512xbf16, #tpu.memory_space<vmem>>, vector<256x512xbf16>
    %cst = arith.constant dense<0.000000e+00> : vector<16x512xf32>
    %2 = tpu.matmul %0, %1, %cst {dimension_numbers = #tpu.dot_dimension_numbers<[1], [0], [0], [1], [0, 0, 1, 1], [], []>} : vector<16x256xbf16>, vector<256x512xbf16>, vector<16x512xf32> -> vector<16x512xf32>
    %c0_3 = arith.constant 0 : index
    %c0_4 = arith.constant 0 : index
    %3 = vector.load %arg4[%c0_3, %c0_4] : memref<1x256xbf16, #tpu.memory_space<vmem>>, vector<1x256xbf16>
    %4 = vector.broadcast %3 : vector<1x256xbf16> to vector<16x256xbf16>
    %5 = arith.mulf %0, %4 : vector<16x256xbf16>
    %c0_5 = arith.constant 0 : index
    %c0_6 = arith.constant 0 : index
    %6 = vector.load %arg3[%c0_5, %c0_6] : memref<256x512xbf16, #tpu.memory_space<vmem>>, vector<256x512xbf16>
    %cst_7 = arith.constant dense<0.000000e+00> : vector<16x512xf32>
    %7 = tpu.matmul %5, %6, %cst_7 {dimension_numbers = #tpu.dot_dimension_numbers<[1], [0], [0], [1], [0, 0, 1, 1], [], []>} : vector<16x256xbf16>, vector<256x512xbf16>, vector<16x512xf32> -> vector<16x512xf32>
    %c0_8 = arith.constant 0 : index
    %c0_9 = arith.constant 0 : index
    %8 = vector.load %arg5[%c0_8, %c0_9] : memref<1x512xf32, #tpu.memory_space<vmem>>, vector<1x512xf32>
    %9 = vector.broadcast %8 : vector<1x512xf32> to vector<16x512xf32>
    %10 = arith.mulf %7, %9 : vector<16x512xf32>
    %11 = arith.addf %2, %10 : vector<16x512xf32>
    %c0_10 = arith.constant 0 : index
    %c0_11 = arith.constant 0 : index
    %12 = vector.load %arg6[%c0_10, %c0_11] : memref<1x512xf32, #tpu.memory_space<vmem>>, vector<1x512xf32>
    %13 = vector.broadcast %12 : vector<1x512xf32> to vector<16x512xf32>
    %14 = arith.addf %11, %13 : vector<16x512xf32>
    %cst_12 = arith.constant 0.000000e+00 : f32
    %15 = vector.broadcast %cst_12 : f32 to vector<16x512xf32>
    %16 = arith.maximumf %14, %15 : vector<16x512xf32>
    %17 = arith.truncf %16 : vector<16x512xf32> to vector<16x512xbf16>
    %c0_13 = arith.constant 0 : index
    %c0_14 = arith.constant 0 : index
    %18 = vector.load %arg7[%c0_13, %c0_14] : memref<512x128xbf16, #tpu.memory_space<vmem>>, vector<512x128xbf16>
    %cst_15 = arith.constant dense<0.000000e+00> : vector<16x128xf32>
    %19 = tpu.matmul %17, %18, %cst_15 {dimension_numbers = #tpu.dot_dimension_numbers<[1], [0], [0], [1], [0, 0, 1, 1], [], []>} : vector<16x512xbf16>, vector<512x128xbf16>, vector<16x128xf32> -> vector<16x128xf32>
    %c0_16 = arith.constant 0 : index
    %c0_17 = arith.constant 0 : index
    %20 = vector.load %arg9[%c0_16, %c0_17] : memref<1x512xbf16, #tpu.memory_space<vmem>>, vector<1x512xbf16>
    %21 = vector.broadcast %20 : vector<1x512xbf16> to vector<16x512xbf16>
    %22 = arith.mulf %17, %21 : vector<16x512xbf16>
    %c0_18 = arith.constant 0 : index
    %c0_19 = arith.constant 0 : index
    %23 = vector.load %arg8[%c0_18, %c0_19] : memref<512x128xbf16, #tpu.memory_space<vmem>>, vector<512x128xbf16>
    %cst_20 = arith.constant dense<0.000000e+00> : vector<16x128xf32>
    %24 = tpu.matmul %22, %23, %cst_20 {dimension_numbers = #tpu.dot_dimension_numbers<[1], [0], [0], [1], [0, 0, 1, 1], [], []>} : vector<16x512xbf16>, vector<512x128xbf16>, vector<16x128xf32> -> vector<16x128xf32>
    %c0_21 = arith.constant 0 : index
    %c0_22 = arith.constant 0 : index
    %25 = vector.load %arg10[%c0_21, %c0_22] : memref<1x128xf32, #tpu.memory_space<vmem>>, vector<1x128xf32>
    %26 = vector.broadcast %25 : vector<1x128xf32> to vector<16x128xf32>
    %27 = arith.mulf %24, %26 : vector<16x128xf32>
    %28 = arith.addf %19, %27 : vector<16x128xf32>
    %c0_23 = arith.constant 0 : index
    %c0_24 = arith.constant 0 : index
    %29 = vector.load %arg11[%c0_23, %c0_24] : memref<1x128xf32, #tpu.memory_space<vmem>>, vector<1x128xf32>
    %30 = vector.broadcast %29 : vector<1x128xf32> to vector<16x128xf32>
    %31 = arith.addf %28, %30 : vector<16x128xf32>
    %c0_25 = arith.constant 0 : index
    %c0_26 = arith.constant 0 : index
    %32 = vector.load %arg12[%c0_25, %c0_26] : memref<16x128xf32, #tpu.memory_space<vmem>>, vector<16x128xf32>
    tpu.vector_store %arg12[%c0_25, %c0_26], %31 {strides = array<i32>} : memref<16x128xf32, #tpu.memory_space<vmem>>, vector<16x128xf32>,
    return
  }
  func.func @transform_0(%arg0: i32) -> (i32, i32) {
    %c0_i32 = arith.constant 0 : i32
    %c0_i32_0 = arith.constant 0 : i32
    return %arg0, %c0_i32 : i32, i32
  }
  func.func @transform_1(%arg0: i32) -> (i32, i32) {
    %c0_i32 = arith.constant 0 : i32
    %c0_i32_0 = arith.constant 0 : i32
    %c0_i32_1 = arith.constant 0 : i32
    return %c0_i32, %c0_i32_0 : i32, i32
  }
  func.func @transform_2(%arg0: i32) -> (i32, i32) {
    %c0_i32 = arith.constant 0 : i32
    %c0_i32_0 = arith.constant 0 : i32
    %c0_i32_1 = arith.constant 0 : i32
    return %c0_i32, %c0_i32_0 : i32, i32
  }
  func.func @transform_3(%arg0: i32) -> (i32, i32) {
    %c0_i32 = arith.constant 0 : i32
    %c0_i32_0 = arith.constant 0 : i32
    %c0_i32_1 = arith.constant 0 : i32
    return %c0_i32, %c0_i32_0 : i32, i32
  }
  func.func @transform_4(%arg0: i32) -> (i32, i32) {
    %c0_i32 = arith.constant 0 : i32
    %c0_i32_0 = arith.constant 0 : i32
    %c0_i32_1 = arith.constant 0 : i32
    return %c0_i32, %c0_i32_0 : i32, i32
  }
  func.func @transform_5(%arg0: i32) -> (i32, i32) {
    %c0_i32 = arith.constant 0 : i32
    %c0_i32_0 = arith.constant 0 : i32
    %c0_i32_1 = arith.constant 0 : i32
    return %c0_i32, %c0_i32_0 : i32, i32
  }
  func.func @transform_6(%arg0: i32) -> (i32, i32) {
    %c0_i32 = arith.constant 0 : i32
    %c0_i32_0 = arith.constant 0 : i32
    %c0_i32_1 = arith.constant 0 : i32
    return %c0_i32, %c0_i32_0 : i32, i32
  }
  func.func @transform_7(%arg0: i32) -> (i32, i32) {
    %c0_i32 = arith.constant 0 : i32
    %c0_i32_0 = arith.constant 0 : i32
    %c0_i32_1 = arith.constant 0 : i32
    return %c0_i32, %c0_i32_0 : i32, i32
  }
  func.func @transform_8(%arg0: i32) -> (i32, i32) {
    %c0_i32 = arith.constant 0 : i32
    %c0_i32_0 = arith.constant 0 : i32
    %c0_i32_1 = arith.constant 0 : i32
    return %c0_i32, %c0_i32_0 : i32, i32
  }
  func.func @transform_9(%arg0: i32) -> (i32, i32) {
    %c0_i32 = arith.constant 0 : i32
    %c0_i32_0 = arith.constant 0 : i32
    %c0_i32_1 = arith.constant 0 : i32
    return %c0_i32, %c0_i32_0 : i32, i32
  }
  func.func @transform_10(%arg0: i32) -> (i32, i32) {
    %c0_i32 = arith.constant 0 : i32
    %c0_i32_0 = arith.constant 0 : i32
    %c0_i32_1 = arith.constant 0 : i32
    return %c0_i32, %c0_i32_0 : i32, i32
  }
  func.func @transform_11(%arg0: i32) -> (i32, i32) {
    %c0_i32 = arith.constant 0 : i32
    %c0_i32_0 = arith.constant 0 : i32
    return %arg0, %c0_i32 : i32, i32
  }
}

</mosaic_0001>

<llo_original>
// kernel: dqn_forward.6
$region0: #{dqn_forward.6}
  #allocation0 [shape = 'u32[]', space=smem, size = 0x4, offset = 0x4, fixed_abs, tag = 'smem constant byte address 0x4 - core index']
  #allocation1 [shape = 'u32[72,128]{1,0:T(1,128)}', space=vmem, size = 0x9000, scoped, tag = 'internal scratch']
  %s0 = inlined_call_operand.vmem [shape: bf16[208,256], index: 0, kind: input, shape index: {}]
  %s1 = inlined_call_operand.vmem [shape: bf16[256,128], index: 1, kind: input, shape index: {}]
  %s2 = inlined_call_operand.vmem [shape: f32[1,128], index: 2, kind: input, shape index: {}]
  %s3 = inlined_call_operand.vmem [shape: bf16[208,128], index: 3, kind: output, shape index: {}]
  %s4 = sld [smem:[#allocation0]]
  $region22: #{dqn_forward.6} parent=0
    _
  %s6 = ssub.s32 1, %s4
  %s7 = scalar_select 0, %s6, %s4
  // Predicated region
  $region2: #{dqn_forward.6} parent=0 // pred_check
    _
  $region3: #{dqn_forward.6} parent=0 // pred_check_branch
    %9 = sbr.rel (0) target = $region5
  $region4: #{dqn_forward.6} parent=0 // pred_region
    _
  $region5: #{dqn_forward.6} parent=0 // pred_fallthru
    _
  // Predicated region
  $region6: #{dqn_forward.6} parent=0 // pred_check
    _
  $region7: #{dqn_forward.6} parent=0 // pred_check_branch
    %11 = sbr.rel (0) target = $region9
  $region8: #{dqn_forward.6} parent=0 // pred_region
    _
  $region9: #{dqn_forward.6} parent=0 // pred_fallthru
    _
  // Predicated region
  $region10: #{dqn_forward.6} parent=0 // pred_check
    _
  $region11: #{dqn_forward.6} parent=0 // pred_check_branch
    %13 = sbr.rel (0) target = $region13
  $region12: #{dqn_forward.6} parent=0 // pred_region
    _
  $region13: #{dqn_forward.6} parent=0 // pred_fallthru
    _
  %v14 = vld [vmem:[%s0] sm:$0xff]
  %v15 = vld [vmem:[%s0 + $0x8] sm:$0xff]
  %v16 = vld [vmem:[%s0 + $0x10] sm:$0xff]
  %v17 = vld [vmem:[%s0 + $0x18] sm:$0xff]
  %v18 = vld [vmem:[%s0 + $0x20] sm:$0xff]
  %v19 = vld [vmem:[%s0 + $0x28] sm:$0xff]
  %v20 = vld [vmem:[%s0 + $0x30] sm:$0xff]
  %v21 = vld [vmem:[%s0 + $0x38] sm:$0xff]
  %v22 = vld [vmem:[%s0 + $0x40] sm:$0xff]
  %v23 = vld [vmem:[%s0 + $0x48] sm:$0xff]
  %v24 = vld [vmem:[%s0 + $0x50] sm:$0xff]
  %v25 = vld [vmem:[%s0 + $0x58] sm:$0xff]
  %v26 = vld [vmem:[%s0 + $0x60] sm:$0xff]
  %v27 = vld [vmem:[%s0 + $0x68] sm:$0xff]
  %v28 = vld [vmem:[%s0 + $0x70] sm:$0xff]
  %v29 = vld [vmem:[%s0 + $0x78] sm:$0xff]
  %v30 = vld [vmem:[%s0 + $0x80] sm:$0xff]
  %v31 = vld [vmem:[%s0 + $0x88] sm:$0xff]
  %v32 = vld [vmem:[%s0 + $0x90] sm:$0xff]
  %v33 = vld [vmem:[%s0 + $0x98] sm:$0xff]
  %v34 = vld [vmem:[%s0 + $0xa0] sm:$0xff]
  %v35 = vld [vmem:[%s0 + $0xa8] sm:$0xff]
  %v36 = vld [vmem:[%s0 + $0xb0] sm:$0xff]
  %v37 = vld [vmem:[%s0 + $0xb8] sm:$0xff]
  %v38 = vld [vmem:[%s0 + $0xc0] sm:$0xff]
  %v39 = vld [vmem:[%s0 + $0xc8] sm:$0xff]
  %v40 = vld [vmem:[%s1] sm:$0xf]
  %v41 = vld [vmem:[%s1 + $0x4] sm:$0xf]
  %v42 = vld [vmem:[%s1 + $0x8] sm:$0xf]
  %v43 = vld [vmem:[%s1 + $0xc] sm:$0xf]
  %v44 = vld [vmem:[%s1 + $0x10] sm:$0xf]
  %v45 = vld [vmem:[%s1 + $0x14] sm:$0xf]
  %v46 = vld [vmem:[%s1 + $0x18] sm:$0xf]
  %v47 = vld [vmem:[%s1 + $0x1c] sm:$0xf]
  %v48 = vld [vmem:[%s1 + $0x20] sm:$0xf]
  %v49 = vld [vmem:[%s1 + $0x24] sm:$0xf]
  %v50 = vld [vmem:[%s1 + $0x28] sm:$0xf]
  %v51 = vld [vmem:[%s1 + $0x2c] sm:$0xf]
  %v52 = vld [vmem:[%s1 + $0x30] sm:$0xf]
  %v53 = vld [vmem:[%s1 + $0x34] sm:$0xf]
  %v54 = vld [vmem:[%s1 + $0x38] sm:$0xf]
  %v55 = vld [vmem:[%s1 + $0x3c] sm:$0xf]
  %v56 = vld [vmem:[%s1 + $0x40] sm:$0xf]
  %v57 = vld [vmem:[%s1 + $0x44] sm:$0xf]
  %v58 = vld [vmem:[%s1 + $0x48] sm:$0xf]
  %v59 = vld [vmem:[%s1 + $0x4c] sm:$0xf]
  %v60 = vld [vmem:[%s1 + $0x50] sm:$0xf]
  %v61 = vld [vmem:[%s1 + $0x54] sm:$0xf]
  %v62 = vld [vmem:[%s1 + $0x58] sm:$0xf]
  %v63 = vld [vmem:[%s1 + $0x5c] sm:$0xf]
  %v64 = vld [vmem:[%s1 + $0x60] sm:$0xf]
  %v65 = vld [vmem:[%s1 + $0x64] sm:$0xf]
  %v66 = vld [vmem:[%s1 + $0x68] sm:$0xf]
  %v67 = vld [vmem:[%s1 + $0x6c] sm:$0xf]
  %v68 = vld [vmem:[%s1 + $0x70] sm:$0xf]
  %v69 = vld [vmem:[%s1 + $0x74] sm:$0xf]
  %v70 = vld [vmem:[%s1 + $0x78] sm:$0xf]
  %v71 = vld [vmem:[%s1 + $0x7c] sm:$0xf]
  %v72 = vld [vmem:[%s2] sm:$0x1]
  %v74 = vperm.slane %v72, 0
  %v102 = vunpack.c.l.b16 %v14
  %v103 = vunpack.c.h.b16 %v14
  %v104 = vunpack.c.l.b16 %v15
  %v105 = vunpack.c.h.b16 %v15
  %v106 = vunpack.c.l.b16 %v16
  %v107 = vunpack.c.h.b16 %v16
  %v108 = vunpack.c.l.b16 %v17
  %v109 = vunpack.c.h.b16 %v17
  %v110 = vunpack.c.l.b16 %v18
  %v111 = vunpack.c.h.b16 %v18
  %v112 = vunpack.c.l.b16 %v19
  %v113 = vunpack.c.h.b16 %v19
  %v114 = vunpack.c.l.b16 %v20
  %v115 = vunpack.c.h.b16 %v20
  %v116 = vunpack.c.l.b16 %v21
  %v117 = vunpack.c.h.b16 %v21
  %v118 = vunpack.c.l.b16 %v22
  %v119 = vunpack.c.h.b16 %v22
  %v120 = vunpack.c.l.b16 %v23
  %v121 = vunpack.c.h.b16 %v23
  %v122 = vunpack.c.l.b16 %v24
  %v123 = vunpack.c.h.b16 %v24
  %v124 = vunpack.c.l.b16 %v25
  %v125 = vunpack.c.h.b16 %v25
  %v126 = vunpack.c.l.b16 %v26
  %v127 = vunpack.c.h.b16 %v26
  %v128 = vunpack.c.l.b16 %v27
  %v129 = vunpack.c.h.b16 %v27
  %v130 = vunpack.c.l.b16 %v28
  %v131 = vunpack.c.h.b16 %v28
  %v132 = vunpack.c.l.b16 %v29
  %v133 = vunpack.c.h.b16 %v29
  %v134 = vunpack.c.l.b16 %v30
  %v135 = vunpack.c.h.b16 %v30
  %v136 = vunpack.c.l.b16 %v31
  %v137 = vunpack.c.h.b16 %v31
  %v138 = vunpack.c.l.b16 %v32
  %v139 = vunpack.c.h.b16 %v32
  %v140 = vunpack.c.l.b16 %v33
  %v141 = vunpack.c.h.b16 %v33
  %v142 = vunpack.c.l.b16 %v34
  %v143 = vunpack.c.h.b16 %v34
  %v144 = vunpack.c.l.b16 %v35
  %v145 = vunpack.c.h.b16 %v35
  %v146 = vunpack.c.l.b16 %v36
  %v147 = vunpack.c.h.b16 %v36
  %v148 = vunpack.c.l.b16 %v37
  %v149 = vunpack.c.h.b16 %v37
  %v150 = vunpack.c.l.b16 %v38
  %v151 = vunpack.c.h.b16 %v38
  %v152 = vunpack.c.l.b16 %v39
  %v153 = vunpack.c.h.b16 %v39
  %v154 = vpack.c.b16 %v104, %v102
  %v155 = vpack.c.b16 %v105, %v103
  %v156 = vpack.c.b16 %v108, %v106
  %v157 = vpack.c.b16 %v109, %v107
  %v158 = vpack.c.b16 %v112, %v110
  %v159 = vpack.c.b16 %v113, %v111
  %v160 = vpack.c.b16 %v116, %v114
  %v161 = vpack.c.b16 %v117, %v115
  %v162 = vpack.c.b16 %v120, %v118
  %v163 = vpack.c.b16 %v121, %v119
  %v164 = vpack.c.b16 %v124, %v122
  %v165 = vpack.c.b16 %v125, %v123
  %v166 = vpack.c.b16 %v128, %v126
  %v167 = vpack.c.b16 %v129, %v127
  %v168 = vpack.c.b16 %v132, %v130
  %v169 = vpack.c.b16 %v133, %v131
  %v170 = vpack.c.b16 %v136, %v134
  %v171 = vpack.c.b16 %v137, %v135
  %v172 = vpack.c.b16 %v140, %v138
  %v173 = vpack.c.b16 %v141, %v139
  %v174 = vpack.c.b16 %v144, %v142
  %v175 = vpack.c.b16 %v145, %v143
  %v176 = vpack.c.b16 %v148, %v146
  %v177 = vpack.c.b16 %v149, %v147
  %v178 = vpack.c.b16 %v152, %v150
  %v179 = vpack.c.b16 %v153, %v151
  %v238 = vunpack.c.l.b16 %v40
  %v239 = vunpack.c.l.b16 %v41
  %v240 = vunpack.c.l.b16 %v42
  %v241 = vunpack.c.l.b16 %v43
  %v242 = vunpack.c.l.b16 %v44
  %v243 = vunpack.c.l.b16 %v45
  %v244 = vunpack.c.l.b16 %v46
  %v245 = vunpack.c.l.b16 %v47
  %v246 = vunpack.c.l.b16 %v48
  %v247 = vunpack.c.l.b16 %v49
  %v248 = vunpack.c.l.b16 %v50
  %v249 = vunpack.c.l.b16 %v51
  %v250 = vunpack.c.l.b16 %v52
  %v251 = vunpack.c.l.b16 %v53
  %v252 = vunpack.c.l.b16 %v54
  %v253 = vunpack.c.l.b16 %v55
  %v254 = vunpack.c.l.b16 %v56
  %v255 = vunpack.c.l.b16 %v57
  %v256 = vunpack.c.l.b16 %v58
  %v257 = vunpack.c.l.b16 %v59
  %v258 = vunpack.c.l.b16 %v60
  %v259 = vunpack.c.l.b16 %v61
  %v260 = vunpack.c.l.b16 %v62
  %v261 = vunpack.c.l.b16 %v63
  %v262 = vunpack.c.l.b16 %v64
  %v263 = vunpack.c.l.b16 %v65
  %v264 = vunpack.c.l.b16 %v66
  %v265 = vunpack.c.l.b16 %v67
  %v266 = vunpack.c.l.b16 %v68
  %v267 = vunpack.c.l.b16 %v69
  %v268 = vunpack.c.l.b16 %v70
  %v269 = vunpack.c.l.b16 %v71
  %v270 = vpack.c.b16 %v239, %v238
  %v271 = vpack.c.b16 %v241, %v240
  %v272 = vpack.c.b16 %v243, %v242
  %v273 = vpack.c.b16 %v245, %v244
  %v274 = vpack.c.b16 %v247, %v246
  %v275 = vpack.c.b16 %v249, %v248
  %v276 = vpack.c.b16 %v251, %v250
  %v277 = vpack.c.b16 %v253, %v252
  %v278 = vpack.c.b16 %v255, %v254
  %v279 = vpack.c.b16 %v257, %v256
  %v280 = vpack.c.b16 %v259, %v258
  %v281 = vpack.c.b16 %v261, %v260
  %v282 = vpack.c.b16 %v263, %v262
  %v283 = vpack.c.b16 %v265, %v264
  %v284 = vpack.c.b16 %v267, %v266
  %v285 = vpack.c.b16 %v269, %v268
  %302 = vmatpush.bf16.msra.mxu0 %v277
  %303 = vmatpush.bf16.msra.mxu0 %v276
  %304 = vmatpush.bf16.msra.mxu0 %v275
  %305 = vmatpush.bf16.msra.mxu0 %v274
  %306 = vmatpush.bf16.msra.mxu0 %v273
  %307 = vmatpush.bf16.msra.mxu0 %v272
  %308 = vmatpush.bf16.msra.mxu0 %v271
  %309 = vmatpush.bf16.msra.mxu0 %v270
  %310 = vmatmul.bf16.gmra.mxu0 %v154
  %v311 = vpop.f32.mrf.mxu0
  %v312 = vadd.f32 %v74, %v311
  %v313 = vpop.f32.mrf.mxu0
  %v314 = vadd.f32 %v74, %v313
  %315 = vmatmul.bf16.gmra.mxu0 %v156
  %v316 = vpop.f32.mrf.mxu0
  %v317 = vadd.f32 %v74, %v316
  %v318 = vpop.f32.mrf.mxu0
  %v319 = vadd.f32 %v74, %v318
  %320 = vmatmul.bf16.gmra.mxu0 %v158
  %v321 = vpop.f32.mrf.mxu0
  %v322 = vadd.f32 %v74, %v321
  %v323 = vpop.f32.mrf.mxu0
  %v324 = vadd.f32 %v74, %v323
  %325 = vmatmul.bf16.gmra.mxu0 %v160
  %v326 = vpop.f32.mrf.mxu0
  %v327 = vadd.f32 %v74, %v326
  %v328 = vpop.f32.mrf.mxu0
  %v329 = vadd.f32 %v74, %v328
  %330 = vmatmul.bf16.gmra.mxu0 %v162
  %v331 = vpop.f32.mrf.mxu0
  %v332 = vadd.f32 %v74, %v331
  %v333 = vpop.f32.mrf.mxu0
  %v334 = vadd.f32 %v74, %v333
  %335 = vmatmul.bf16.gmra.mxu0 %v164
  %v336 = vpop.f32.mrf.mxu0
  %v337 = vadd.f32 %v74, %v336
  %v338 = vpop.f32.mrf.mxu0
  %v339 = vadd.f32 %v74, %v338
  %340 = vmatmul.bf16.gmra.mxu0 %v166
  %v341 = vpop.f32.mrf.mxu0
  %v342 = vadd.f32 %v74, %v341
  %v343 = vpop.f32.mrf.mxu0
  %v344 = vadd.f32 %v74, %v343
  %345 = vmatmul.bf16.gmra.mxu0 %v168
  %v346 = vpop.f32.mrf.mxu0
  %v347 = vadd.f32 %v74, %v346
  %v348 = vpop.f32.mrf.mxu0
  %v349 = vadd.f32 %v74, %v348
  %350 = vmatmul.bf16.gmra.mxu0 %v170
  %v351 = vpop.f32.mrf.mxu0
  %v352 = vadd.f32 %v74, %v351
  %v353 = vpop.f32.mrf.mxu0
  %v354 = vadd.f32 %v74, %v353
  %355 = vmatmul.bf16.gmra.mxu0 %v172
  %v356 = vpop.f32.mrf.mxu0
  %v357 = vadd.f32 %v74, %v356
  %v358 = vpop.f32.mrf.mxu0
  %v359 = vadd.f32 %v74, %v358
  %360 = vmatmul.bf16.gmra.mxu0 %v174
  %v361 = vpop.f32.mrf.mxu0
  %v362 = vadd.f32 %v74, %v361
  %v363 = vpop.f32.mrf.mxu0
  %v364 = vadd.f32 %v74, %v363
  %365 = vmatmul.bf16.gmra.mxu0 %v176
  %v366 = vpop.f32.mrf.mxu0
  %v367 = vadd.f32 %v74, %v366
  %v368 = vpop.f32.mrf.mxu0
  %v369 = vadd.f32 %v74, %v368
  %370 = vmatmul.bf16.gmra.mxu0 %v178
  %v371 = vpop.f32.mrf.mxu0
  %v372 = vadd.f32 %v74, %v371
  %v373 = vpop.f32.mrf.mxu0
  %v374 = vadd.f32 %v74, %v373
  %375 = vdwg.mxu0
  %376 = vmatpush.bf16.msra.mxu0 %v285
  %377 = vmatpush.bf16.msra.mxu0 %v284
  %378 = vmatpush.bf16.msra.mxu0 %v283
  %379 = vmatpush.bf16.msra.mxu0 %v282
  %380 = vmatpush.bf16.msra.mxu0 %v281
  %381 = vmatpush.bf16.msra.mxu0 %v280
  %382 = vmatpush.bf16.msra.mxu0 %v279
  %383 = vmatpush.bf16.msra.mxu0 %v278
  %384 = vmatmul.bf16.gmra.mxu0 %v155
  %v385 = vpop.f32.mrf.mxu0
  %v386 = vadd.f32 %v312, %v385
  %v387 = vpop.f32.mrf.mxu0
  %v388 = vadd.f32 %v314, %v387
  %389 = vmatmul.bf16.gmra.mxu0 %v157
  %v390 = vpop.f32.mrf.mxu0
  %v391 = vadd.f32 %v317, %v390
  %v392 = vpop.f32.mrf.mxu0
  %v393 = vadd.f32 %v319, %v392
  %394 = vmatmul.bf16.gmra.mxu0 %v159
  %v395 = vpop.f32.mrf.mxu0
  %v396 = vadd.f32 %v322, %v395
  %v397 = vpop.f32.mrf.mxu0
  %v398 = vadd.f32 %v324, %v397
  %399 = vmatmul.bf16.gmra.mxu0 %v161
  %v400 = vpop.f32.mrf.mxu0
  %v401 = vadd.f32 %v327, %v400
  %v402 = vpop.f32.mrf.mxu0
  %v403 = vadd.f32 %v329, %v402
  %404 = vmatmul.bf16.gmra.mxu0 %v163
  %v405 = vpop.f32.mrf.mxu0
  %v406 = vadd.f32 %v332, %v405
  %v407 = vpop.f32.mrf.mxu0
  %v408 = vadd.f32 %v334, %v407
  %409 = vmatmul.bf16.gmra.mxu0 %v165
  %v410 = vpop.f32.mrf.mxu0
  %v411 = vadd.f32 %v337, %v410
  %v412 = vpop.f32.mrf.mxu0
  %v413 = vadd.f32 %v339, %v412
  %414 = vmatmul.bf16.gmra.mxu0 %v167
  %v415 = vpop.f32.mrf.mxu0
  %v416 = vadd.f32 %v342, %v415
  %v417 = vpop.f32.mrf.mxu0
  %v418 = vadd.f32 %v344, %v417
  %419 = vmatmul.bf16.gmra.mxu0 %v169
  %v420 = vpop.f32.mrf.mxu0
  %v421 = vadd.f32 %v347, %v420
  %v422 = vpop.f32.mrf.mxu0
  %v423 = vadd.f32 %v349, %v422
  %424 = vmatmul.bf16.gmra.mxu0 %v171
  %v425 = vpop.f32.mrf.mxu0
  %v426 = vadd.f32 %v352, %v425
  %v427 = vpop.f32.mrf.mxu0
  %v428 = vadd.f32 %v354, %v427
  %429 = vmatmul.bf16.gmra.mxu0 %v173
  %v430 = vpop.f32.mrf.mxu0
  %v431 = vadd.f32 %v357, %v430
  %v432 = vpop.f32.mrf.mxu0
  %v433 = vadd.f32 %v359, %v432
  %434 = vmatmul.bf16.gmra.mxu0 %v175
  %v435 = vpop.f32.mrf.mxu0
  %v436 = vadd.f32 %v362, %v435
  %v437 = vpop.f32.mrf.mxu0
  %v438 = vadd.f32 %v364, %v437
  %439 = vmatmul.bf16.gmra.mxu0 %v177
  %v440 = vpop.f32.mrf.mxu0
  %v441 = vadd.f32 %v367, %v440
  %v442 = vpop.f32.mrf.mxu0
  %v443 = vadd.f32 %v369, %v442
  %444 = vmatmul.bf16.gmra.mxu0 %v179
  %v445 = vpop.f32.mrf.mxu0
  %v446 = vadd.f32 %v372, %v445
  %v447 = vpop.f32.mrf.mxu0
  %v448 = vadd.f32 %v374, %v447
  %449 = vdwg.mxu0
  %v450 = vmax.f32 %v386, 0.0
  %v451 = vmax.f32 %v388, 0.0
  %v452 = vmax.f32 %v391, 0.0
  %v453 = vmax.f32 %v393, 0.0
  %v454 = vmax.f32 %v396, 0.0
  %v455 = vmax.f32 %v398, 0.0
  %v456 = vmax.f32 %v401, 0.0
  %v457 = vmax.f32 %v403, 0.0
  %v458 = vmax.f32 %v406, 0.0
  %v459 = vmax.f32 %v408, 0.0
  %v460 = vmax.f32 %v411, 0.0
  %v461 = vmax.f32 %v413, 0.0
  %v462 = vmax.f32 %v416, 0.0
  %v463 = vmax.f32 %v418, 0.0
  %v464 = vmax.f32 %v421, 0.0
  %v465 = vmax.f32 %v423, 0.0
  %v466 = vmax.f32 %v426, 0.0
  %v467 = vmax.f32 %v428, 0.0
  %v468 = vmax.f32 %v431, 0.0
  %v469 = vmax.f32 %v433, 0.0
  %v470 = vmax.f32 %v436, 0.0
  %v471 = vmax.f32 %v438, 0.0
  %v472 = vmax.f32 %v441, 0.0
  %v473 = vmax.f32 %v443, 0.0
  %v474 = vmax.f32 %v446, 0.0
  %v475 = vmax.f32 %v448, 0.0
  %v476 = vpack.c.bf16 %v450, %v450
  %v477 = vpack.c.bf16 %v451, %v451
  %v478 = vpack.c.bf16 %v452, %v452
  %v479 = vpack.c.bf16 %v453, %v453
  %v480 = vpack.c.bf16 %v454, %v454
  %v481 = vpack.c.bf16 %v455, %v455
  %v482 = vpack.c.bf16 %v456, %v456
  %v483 = vpack.c.bf16 %v457, %v457
  %v484 = vpack.c.bf16 %v458, %v458
  %v485 = vpack.c.bf16 %v459, %v459
  %v486 = vpack.c.bf16 %v460, %v460
  %v487 = vpack.c.bf16 %v461, %v461
  %v488 = vpack.c.bf16 %v462, %v462
  %v489 = vpack.c.bf16 %v463, %v463
  %v490 = vpack.c.bf16 %v464, %v464
  %v491 = vpack.c.bf16 %v465, %v465
  %v492 = vpack.c.bf16 %v466, %v466
  %v493 = vpack.c.bf16 %v467, %v467
  %v494 = vpack.c.bf16 %v468, %v468
  %v495 = vpack.c.bf16 %v469, %v469
  %v496 = vpack.c.bf16 %v470, %v470
  %v497 = vpack.c.bf16 %v471, %v471
  %v498 = vpack.c.bf16 %v472, %v472
  %v499 = vpack.c.bf16 %v473, %v473
  %v500 = vpack.c.bf16 %v474, %v474
  %v501 = vpack.c.bf16 %v475, %v475
  %502 = vst [vmem:[%s3] sm:$0xf] %v476
  %503 = vst [vmem:[%s3 + $0x4] sm:$0xf] %v477
  %504 = vst [vmem:[%s3 + $0x8] sm:$0xf] %v478
  %505 = vst [vmem:[%s3 + $0xc] sm:$0xf] %v479
  %506 = vst [vmem:[%s3 + $0x10] sm:$0xf] %v480
  %507 = vst [vmem:[%s3 + $0x14] sm:$0xf] %v481
  %508 = vst [vmem:[%s3 + $0x18] sm:$0xf] %v482
  %509 = vst [vmem:[%s3 + $0x1c] sm:$0xf] %v483
  %510 = vst [vmem:[%s3 + $0x20] sm:$0xf] %v484
  %511 = vst [vmem:[%s3 + $0x24] sm:$0xf] %v485
  %512 = vst [vmem:[%s3 + $0x28] sm:$0xf] %v486
  %513 = vst [vmem:[%s3 + $0x2c] sm:$0xf] %v487
  %514 = vst [vmem:[%s3 + $0x30] sm:$0xf] %v488
  %515 = vst [vmem:[%s3 + $0x34] sm:$0xf] %v489
  %516 = vst [vmem:[%s3 + $0x38] sm:$0xf] %v490
  %517 = vst [vmem:[%s3 + $0x3c] sm:$0xf] %v491
  %518 = vst [vmem:[%s3 + $0x40] sm:$0xf] %v492
  %519 = vst [vmem:[%s3 + $0x44] sm:$0xf] %v493
  %520 = vst [vmem:[%s3 + $0x48] sm:$0xf] %v494
  %521 = vst [vmem:[%s3 + $0x4c] sm:$0xf] %v495
  %522 = vst [vmem:[%s3 + $0x50] sm:$0xf] %v496
  %523 = vst [vmem:[%s3 + $0x54] sm:$0xf] %v497
  %524 = vst [vmem:[%s3 + $0x58] sm:$0xf] %v498
  %525 = vst [vmem:[%s3 + $0x5c] sm:$0xf] %v499
  %526 = vst [vmem:[%s3 + $0x60] sm:$0xf] %v500
  %527 = vst [vmem:[%s3 + $0x64] sm:$0xf] %v501
  // Predicated region
  $region14: #{dqn_forward.6} parent=0 // pred_check
    _
  $region15: #{dqn_forward.6} parent=0 // pred_check_branch
    %529 = sbr.rel (0) target = $region17
  $region16: #{dqn_forward.6} parent=0 // pred_region
    _
  $region17: #{dqn_forward.6} parent=0 // pred_fallthru
    _
  // Predicated region
  $region18: #{dqn_forward.6} parent=0 // pred_check
    _
  $region19: #{dqn_forward.6} parent=0 // pred_check_branch
    %531 = sbr.rel (0) target = $region21
  $region20: #{dqn_forward.6} parent=0 // pred_region
    _
  $region21: #{dqn_forward.6} parent=0 // pred_fallthru
    _

// kernel: dqn_forward.7
$region0: #{dqn_forward.7}
  #allocation0 [shape = 'u32[]', space=smem, size = 0x4, offset = 0x4, fixed_abs, tag = 'smem constant byte address 0x4 - core index']
  #allocation1 [shape = 'u32[72,128]{1,0:T(1,128)}', space=vmem, size = 0x9000, scoped, tag = 'internal scratch']
  %s0 = inlined_call_operand.vmem [shape: bf16[32,512], index: 0, kind: input, shape index: {}]
  %s1 = inlined_call_operand.vmem [shape: bf16[512,128], index: 1, kind: input, shape index: {}]
  %s2 = inlined_call_operand.vmem [shape: f32[1,128], index: 2, kind: input, shape index: {}]
  %s3 = inlined_call_operand.vmem [shape: bf16[32,128], index: 3, kind: output, shape index: {}]
  %s4 = sld [smem:[#allocation0]]
  $region22: #{dqn_forward.7} parent=0
    _
  %s6 = ssub.s32 1, %s4
  %s7 = scalar_select 0, %s6, %s4
  // Predicated region
  $region2: #{dqn_forward.7} parent=0 // pred_check
    _
  $region3: #{dqn_forward.7} parent=0 // pred_check_branch
    %9 = sbr.rel (0) target = $region5
  $region4: #{dqn_forward.7} parent=0 // pred_region
    _
  $region5: #{dqn_forward.7} parent=0 // pred_fallthru
    _
  // Predicated region
  $region6: #{dqn_forward.7} parent=0 // pred_check
    _
  $region7: #{dqn_forward.7} parent=0 // pred_check_branch
    %11 = sbr.rel (0) target = $region9
  $region8: #{dqn_forward.7} parent=0 // pred_region
    _
  $region9: #{dqn_forward.7} parent=0 // pred_fallthru
    _
  // Predicated region
  $region10: #{dqn_forward.7} parent=0 // pred_check
    _
  $region11: #{dqn_forward.7} parent=0 // pred_check_branch
    %13 = sbr.rel (0) target = $region13
  $region12: #{dqn_forward.7} parent=0 // pred_region
    _
  $region13: #{dqn_forward.7} parent=0 // pred_fallthru
    _
  %v14 = vld [vmem:[%s0] sm:$0xff]
  %v15 = vld [vmem:[%s0 + $0x8] sm:$0xff]
  %v16 = vld [vmem:[%s0 + $0x10] sm:$0xff]
  %v17 = vld [vmem:[%s0 + $0x18] sm:$0xff]
  %v18 = vld [vmem:[%s0 + $0x20] sm:$0xff]
  %v19 = vld [vmem:[%s0 + $0x28] sm:$0xff]
  %v20 = vld [vmem:[%s0 + $0x30] sm:$0xff]
  %v21 = vld [vmem:[%s0 + $0x38] sm:$0xff]
  %v22 = vld [vmem:[%s1] sm:$0xf]
  %v23 = vld [vmem:[%s1 + $0x4] sm:$0xf]
  %v24 = vld [vmem:[%s1 + $0x8] sm:$0xf]
  %v25 = vld [vmem:[%s1 + $0xc] sm:$0xf]
  %v26 = vld [vmem:[%s1 + $0x10] sm:$0xf]
  %v27 = vld [vmem:[%s1 + $0x14] sm:$0xf]
  %v28 = vld [vmem:[%s1 + $0x18] sm:$0xf]
  %v29 = vld [vmem:[%s1 + $0x1c] sm:$0xf]
  %v30 = vld [vmem:[%s1 + $0x20] sm:$0xf]
  %v31 = vld [vmem:[%s1 + $0x24] sm:$0xf]
  %v32 = vld [vmem:[%s1 + $0x28] sm:$0xf]
  %v33 = vld [vmem:[%s1 + $0x2c] sm:$0xf]
  %v34 = vld [vmem:[%s1 + $0x30] sm:$0xf]
  %v35 = vld [vmem:[%s1 + $0x34] sm:$0xf]
  %v36 = vld [vmem:[%s1 + $0x38] sm:$0xf]
  %v37 = vld [vmem:[%s1 + $0x3c] sm:$0xf]
  %v38 = vld [vmem:[%s1 + $0x40] sm:$0xf]
  %v39 = vld [vmem:[%s1 + $0x44] sm:$0xf]
  %v40 = vld [vmem:[%s1 + $0x48] sm:$0xf]
  %v41 = vld [vmem:[%s1 + $0x4c] sm:$0xf]
  %v42 = vld [vmem:[%s1 + $0x50] sm:$0xf]
  %v43 = vld [vmem:[%s1 + $0x54] sm:$0xf]
  %v44 = vld [vmem:[%s1 + $0x58] sm:$0xf]
  %v45 = vld [vmem:[%s1 + $0x5c] sm:$0xf]
  %v46 = vld [vmem:[%s1 + $0x60] sm:$0xf]
  %v47 = vld [vmem:[%s1 + $0x64] sm:$0xf]
  %v48 = vld [vmem:[%s1 + $0x68] sm:$0xf]
  %v49 = vld [vmem:[%s1 + $0x6c] sm:$0xf]
  %v50 = vld [vmem:[%s1 + $0x70] sm:$0xf]
  %v51 = vld [vmem:[%s1 + $0x74] sm:$0xf]
  %v52 = vld [vmem:[%s1 + $0x78] sm:$0xf]
  %v53 = vld [vmem:[%s1 + $0x7c] sm:$0xf]
  %v54 = vld [vmem:[%s1 + $0x80] sm:$0xf]
  %v55 = vld [vmem:[%s1 + $0x84] sm:$0xf]
  %v56 = vld [vmem:[%s1 + $0x88] sm:$0xf]
  %v57 = vld [vmem:[%s1 + $0x8c] sm:$0xf]
  %v58 = vld [vmem:[%s1 + $0x90] sm:$0xf]
  %v59 = vld [vmem:[%s1 + $0x94] sm:$0xf]
  %v60 = vld [vmem:[%s1 + $0x98] sm:$0xf]
  %v61 = vld [vmem:[%s1 + $0x9c] sm:$0xf]
  %v62 = vld [vmem:[%s1 + $0xa0] sm:$0xf]
  %v63 = vld [vmem:[%s1 + $0xa4] sm:$0xf]
  %v64 = vld [vmem:[%s1 + $0xa8] sm:$0xf]
  %v65 = vld [vmem:[%s1 + $0xac] sm:$0xf]
  %v66 = vld [vmem:[%s1 + $0xb0] sm:$0xf]
  %v67 = vld [vmem:[%s1 + $0xb4] sm:$0xf]
  %v68 = vld [vmem:[%s1 + $0xb8] sm:$0xf]
  %v69 = vld [vmem:[%s1 + $0xbc] sm:$0xf]
  %v70 = vld [vmem:[%s1 + $0xc0] sm:$0xf]
  %v71 = vld [vmem:[%s1 + $0xc4] sm:$0xf]
  %v72 = vld [vmem:[%s1 + $0xc8] sm:$0xf]
  %v73 = vld [vmem:[%s1 + $0xcc] sm:$0xf]
  %v74 = vld [vmem:[%s1 + $0xd0] sm:$0xf]
  %v75 = vld [vmem:[%s1 + $0xd4] sm:$0xf]
  %v76 = vld [vmem:[%s1 + $0xd8] sm:$0xf]
  %v77 = vld [vmem:[%s1 + $0xdc] sm:$0xf]
  %v78 = vld [vmem:[%s1 + $0xe0] sm:$0xf]
  %v79 = vld [vmem:[%s1 + $0xe4] sm:$0xf]
  %v80 = vld [vmem:[%s1 + $0xe8] sm:$0xf]
  %v81 = vld [vmem:[%s1 + $0xec] sm:$0xf]
  %v82 = vld [vmem:[%s1 + $0xf0] sm:$0xf]
  %v83 = vld [vmem:[%s1 + $0xf4] sm:$0xf]
  %v84 = vld [vmem:[%s1 + $0xf8] sm:$0xf]
  %v85 = vld [vmem:[%s1 + $0xfc] sm:$0xf]
  %v86 = vld [vmem:[%s2] sm:$0x1]
  %v88 = vperm.slane %v86, 0
  %v98 = vunpack.c.l.b16 %v14
  %v99 = vunpack.c.h.b16 %v14
  %v100 = vunpack.c.l.b16 %v15
  %v101 = vunpack.c.h.b16 %v15
  %v102 = vunpack.c.l.b16 %v16
  %v103 = vunpack.c.h.b16 %v16
  %v104 = vunpack.c.l.b16 %v17
  %v105 = vunpack.c.h.b16 %v17
  %v106 = vunpack.c.l.b16 %v18
  %v107 = vunpack.c.h.b16 %v18
  %v108 = vunpack.c.l.b16 %v19
  %v109 = vunpack.c.h.b16 %v19
  %v110 = vunpack.c.l.b16 %v20
  %v111 = vunpack.c.h.b16 %v20
  %v112 = vunpack.c.l.b16 %v21
  %v113 = vunpack.c.h.b16 %v21
  %v114 = vpack.c.b16 %v102, %v98
  %v115 = vpack.c.b16 %v103, %v99
  %v116 = vpack.c.b16 %v104, %v100
  %v117 = vpack.c.b16 %v105, %v101
  %v118 = vpack.c.b16 %v110, %v106
  %v119 = vpack.c.b16 %v111, %v107
  %v120 = vpack.c.b16 %v112, %v108
  %v121 = vpack.c.b16 %v113, %v109
  %v194 = vunpack.c.l.b16 %v22
  %v195 = vunpack.c.l.b16 %v23
  %v196 = vunpack.c.l.b16 %v24
  %v197 = vunpack.c.l.b16 %v25
  %v198 = vunpack.c.l.b16 %v26
  %v199 = vunpack.c.l.b16 %v27
  %v200 = vunpack.c.l.b16 %v28
  %v201 = vunpack.c.l.b16 %v29
  %v202 = vunpack.c.l.b16 %v30
  %v203 = vunpack.c.l.b16 %v31
  %v204 = vunpack.c.l.b16 %v32
  %v205 = vunpack.c.l.b16 %v33
  %v206 = vunpack.c.l.b16 %v34
  %v207 = vunpack.c.l.b16 %v35
  %v208 = vunpack.c.l.b16 %v36
  %v209 = vunpack.c.l.b16 %v37
  %v210 = vunpack.c.l.b16 %v38
  %v211 = vunpack.c.l.b16 %v39
  %v212 = vunpack.c.l.b16 %v40
  %v213 = vunpack.c.l.b16 %v41
  %v214 = vunpack.c.l.b16 %v42
  %v215 = vunpack.c.l.b16 %v43
  %v216 = vunpack.c.l.b16 %v44
  %v217 = vunpack.c.l.b16 %v45
  %v218 = vunpack.c.l.b16 %v46
  %v219 = vunpack.c.l.b16 %v47
  %v220 = vunpack.c.l.b16 %v48
  %v221 = vunpack.c.l.b16 %v49
  %v222 = vunpack.c.l.b16 %v50
  %v223 = vunpack.c.l.b16 %v51
  %v224 = vunpack.c.l.b16 %v52
  %v225 = vunpack.c.l.b16 %v53
  %v226 = vunpack.c.l.b16 %v54
  %v227 = vunpack.c.l.b16 %v55
  %v228 = vunpack.c.l.b16 %v56
  %v229 = vunpack.c.l.b16 %v57
  %v230 = vunpack.c.l.b16 %v58
  %v231 = vunpack.c.l.b16 %v59
  %v232 = vunpack.c.l.b16 %v60
  %v233 = vunpack.c.l.b16 %v61
  %v234 = vunpack.c.l.b16 %v62
  %v235 = vunpack.c.l.b16 %v63
  %v236 = vunpack.c.l.b16 %v64
  %v237 = vunpack.c.l.b16 %v65
  %v238 = vunpack.c.l.b16 %v66
  %v239 = vunpack.c.l.b16 %v67
  %v240 = vunpack.c.l.b16 %v68
  %v241 = vunpack.c.l.b16 %v69
  %v242 = vunpack.c.l.b16 %v70
  %v243 = vunpack.c.l.b16 %v71
  %v244 = vunpack.c.l.b16 %v72
  %v245 = vunpack.c.l.b16 %v73
  %v246 = vunpack.c.l.b16 %v74
  %v247 = vunpack.c.l.b16 %v75
  %v248 = vunpack.c.l.b16 %v76
  %v249 = vunpack.c.l.b16 %v77
  %v250 = vunpack.c.l.b16 %v78
  %v251 = vunpack.c.l.b16 %v79
  %v252 = vunpack.c.l.b16 %v80
  %v253 = vunpack.c.l.b16 %v81
  %v254 = vunpack.c.l.b16 %v82
  %v255 = vunpack.c.l.b16 %v83
  %v256 = vunpack.c.l.b16 %v84
  %v257 = vunpack.c.l.b16 %v85
  %v258 = vpack.c.b16 %v195, %v194
  %v259 = vpack.c.b16 %v197, %v196
  %v260 = vpack.c.b16 %v199, %v198
  %v261 = vpack.c.b16 %v201, %v200
  %v262 = vpack.c.b16 %v203, %v202
  %v263 = vpack.c.b16 %v205, %v204
  %v264 = vpack.c.b16 %v207, %v206
  %v265 = vpack.c.b16 %v209, %v208
  %v266 = vpack.c.b16 %v211, %v210
  %v267 = vpack.c.b16 %v213, %v212
  %v268 = vpack.c.b16 %v215, %v214
  %v269 = vpack.c.b16 %v217, %v216
  %v270 = vpack.c.b16 %v219, %v218
  %v271 = vpack.c.b16 %v221, %v220
  %v272 = vpack.c.b16 %v223, %v222
  %v273 = vpack.c.b16 %v225, %v224
  %v274 = vpack.c.b16 %v227, %v226
  %v275 = vpack.c.b16 %v229, %v228
  %v276 = vpack.c.b16 %v231, %v230
  %v277 = vpack.c.b16 %v233, %v232
  %v278 = vpack.c.b16 %v235, %v234
  %v279 = vpack.c.b16 %v237, %v236
  %v280 = vpack.c.b16 %v239, %v238
  %v281 = vpack.c.b16 %v241, %v240
  %v282 = vpack.c.b16 %v243, %v242
  %v283 = vpack.c.b16 %v245, %v244
  %v284 = vpack.c.b16 %v247, %v246
  %v285 = vpack.c.b16 %v249, %v248
  %v286 = vpack.c.b16 %v251, %v250
  %v287 = vpack.c.b16 %v253, %v252
  %v288 = vpack.c.b16 %v255, %v254
  %v289 = vpack.c.b16 %v257, %v256
  %322 = vmatpush.bf16.msra.mxu0 %v265
  %323 = vmatpush.bf16.msra.mxu0 %v264
  %324 = vmatpush.bf16.msra.mxu0 %v263
  %325 = vmatpush.bf16.msra.mxu0 %v262
  %326 = vmatpush.bf16.msra.mxu0 %v261
  %327 = vmatpush.bf16.msra.mxu0 %v260
  %328 = vmatpush.bf16.msra.mxu0 %v259
  %329 = vmatpush.bf16.msra.mxu0 %v258
  %330 = vmatmul.bf16.gmra.mxu0 %v114
  %v331 = vpop.f32.mrf.mxu0
  %v332 = vadd.f32 %v88, %v331
  %v333 = vpop.f32.mrf.mxu0
  %v334 = vadd.f32 %v88, %v333
  %335 = vmatmul.bf16.gmra.mxu0 %v118
  %v336 = vpop.f32.mrf.mxu0
  %v337 = vadd.f32 %v88, %v336
  %v338 = vpop.f32.mrf.mxu0
  %v339 = vadd.f32 %v88, %v338
  %340 = vdwg.mxu0
  %341 = vmatpush.bf16.msra.mxu0 %v273
  %342 = vmatpush.bf16.msra.mxu0 %v272
  %343 = vmatpush.bf16.msra.mxu0 %v271
  %344 = vmatpush.bf16.msra.mxu0 %v270
  %345 = vmatpush.bf16.msra.mxu0 %v269
  %346 = vmatpush.bf16.msra.mxu0 %v268
  %347 = vmatpush.bf16.msra.mxu0 %v267
  %348 = vmatpush.bf16.msra.mxu0 %v266
  %349 = vmatmul.bf16.gmra.mxu0 %v115
  %v350 = vpop.f32.mrf.mxu0
  %v351 = vadd.f32 %v332, %v350
  %v352 = vpop.f32.mrf.mxu0
  %v353 = vadd.f32 %v334, %v352
  %354 = vmatmul.bf16.gmra.mxu0 %v119
  %v355 = vpop.f32.mrf.mxu0
  %v356 = vadd.f32 %v337, %v355
  %v357 = vpop.f32.mrf.mxu0
  %v358 = vadd.f32 %v339, %v357
  %359 = vdwg.mxu0
  %360 = vmatpush.bf16.msra.mxu0 %v281
  %361 = vmatpush.bf16.msra.mxu0 %v280
  %362 = vmatpush.bf16.msra.mxu0 %v279
  %363 = vmatpush.bf16.msra.mxu0 %v278
  %364 = vmatpush.bf16.msra.mxu0 %v277
  %365 = vmatpush.bf16.msra.mxu0 %v276
  %366 = vmatpush.bf16.msra.mxu0 %v275
  %367 = vmatpush.bf16.msra.mxu0 %v274
  %368 = vmatmul.bf16.gmra.mxu0 %v116
  %v369 = vpop.f32.mrf.mxu0
  %v370 = vadd.f32 %v351, %v369
  %v371 = vpop.f32.mrf.mxu0
  %v372 = vadd.f32 %v353, %v371
  %373 = vmatmul.bf16.gmra.mxu0 %v120
  %v374 = vpop.f32.mrf.mxu0
  %v375 = vadd.f32 %v356, %v374
  %v376 = vpop.f32.mrf.mxu0
  %v377 = vadd.f32 %v358, %v376
  %378 = vdwg.mxu0
  %379 = vmatpush.bf16.msra.mxu0 %v289
  %380 = vmatpush.bf16.msra.mxu0 %v288
  %381 = vmatpush.bf16.msra.mxu0 %v287
  %382 = vmatpush.bf16.msra.mxu0 %v286
  %383 = vmatpush.bf16.msra.mxu0 %v285
  %384 = vmatpush.bf16.msra.mxu0 %v284
  %385 = vmatpush.bf16.msra.mxu0 %v283
  %386 = vmatpush.bf16.msra.mxu0 %v282
  %387 = vmatmul.bf16.gmra.mxu0 %v117
  %v388 = vpop.f32.mrf.mxu0
  %v389 = vadd.f32 %v370, %v388
  %v390 = vpop.f32.mrf.mxu0
  %v391 = vadd.f32 %v372, %v390
  %392 = vmatmul.bf16.gmra.mxu0 %v121
  %v393 = vpop.f32.mrf.mxu0
  %v394 = vadd.f32 %v375, %v393
  %v395 = vpop.f32.mrf.mxu0
  %v396 = vadd.f32 %v377, %v395
  %397 = vdwg.mxu0
  %v398 = vmax.f32 %v389, 0.0
  %v399 = vmax.f32 %v391, 0.0
  %v400 = vmax.f32 %v394, 0.0
  %v401 = vmax.f32 %v396, 0.0
  %v402 = vpack.c.bf16 %v398, %v398
  %v403 = vpack.c.bf16 %v399, %v399
  %v404 = vpack.c.bf16 %v400, %v400
  %v405 = vpack.c.bf16 %v401, %v401
  %406 = vst [vmem:[%s3] sm:$0xf] %v402
  %407 = vst [vmem:[%s3 + $0x4] sm:$0xf] %v403
  %408 = vst [vmem:[%s3 + $0x8] sm:$0xf] %v404
  %409 = vst [vmem:[%s3 + $0xc] sm:$0xf] %v405
  // Predicated region
  $region14: #{dqn_forward.7} parent=0 // pred_check
    _
  $region15: #{dqn_forward.7} parent=0 // pred_check_branch
    %411 = sbr.rel (0) target = $region17
  $region16: #{dqn_forward.7} parent=0 // pred_region
    _
  $region17: #{dqn_forward.7} parent=0 // pred_fallthru
    _
  // Predicated region
  $region18: #{dqn_forward.7} parent=0 // pred_check
    _
  $region19: #{dqn_forward.7} parent=0 // pred_check_branch
    %413 = sbr.rel (0) target = $region21
  $region20: #{dqn_forward.7} parent=0 // pred_region
    _
  $region21: #{dqn_forward.7} parent=0 // pred_fallthru
    _

// kernel: dqn_forward.8
$region0: #{dqn_forward.8}
  #allocation0 [shape = 'u32[]', space=smem, size = 0x4, offset = 0x4, fixed_abs, tag = 'smem constant byte address 0x4 - core index']
  #allocation1 [shape = 'u32[72,128]{1,0:T(1,128)}', space=vmem, size = 0x9000, scoped, tag = 'internal scratch']
  %s0 = inlined_call_operand.vmem [shape: bf16[16,640], index: 0, kind: input, shape index: {}]
  %s1 = inlined_call_operand.vmem [shape: bf16[640,128], index: 1, kind: input, shape index: {}]
  %s2 = inlined_call_operand.vmem [shape: f32[1,128], index: 2, kind: input, shape index: {}]
  %s3 = inlined_call_operand.vmem [shape: bf16[16,128], index: 3, kind: output, shape index: {}]
  %s4 = sld [smem:[#allocation0]]
  $region22: #{dqn_forward.8} parent=0
    _
  %s6 = ssub.s32 1, %s4
  %s7 = scalar_select 0, %s6, %s4
  // Predicated region
  $region2: #{dqn_forward.8} parent=0 // pred_check
    _
  $region3: #{dqn_forward.8} parent=0 // pred_check_branch
    %9 = sbr.rel (0) target = $region5
  $region4: #{dqn_forward.8} parent=0 // pred_region
    _
  $region5: #{dqn_forward.8} parent=0 // pred_fallthru
    _
  // Predicated region
  $region6: #{dqn_forward.8} parent=0 // pred_check
    _
  $region7: #{dqn_forward.8} parent=0 // pred_check_branch
    %11 = sbr.rel (0) target = $region9
  $region8: #{dqn_forward.8} parent=0 // pred_region
    _
  $region9: #{dqn_forward.8} parent=0 // pred_fallthru
    _
  // Predicated region
  $region10: #{dqn_forward.8} parent=0 // pred_check
    _
  $region11: #{dqn_forward.8} parent=0 // pred_check_branch
    %13 = sbr.rel (0) target = $region13
  $region12: #{dqn_forward.8} parent=0 // pred_region
    _
  $region13: #{dqn_forward.8} parent=0 // pred_fallthru
    _
  %v14 = vld [vmem:[%s0] sm:$0xff]
  %v15 = vld [vmem:[%s0 + $0x8] sm:$0xff]
  %v16 = vld [vmem:[%s0 + $0x10] sm:$0xf]
  %v17 = vld [vmem:[%s0 + $0x14] sm:$0xff]
  %v18 = vld [vmem:[%s0 + $0x1c] sm:$0xff]
  %v19 = vld [vmem:[%s0 + $0x24] sm:$0xf]
  %v20 = vld [vmem:[%s1] sm:$0xf]
  %v21 = vld [vmem:[%s1 + $0x4] sm:$0xf]
  %v22 = vld [vmem:[%s1 + $0x8] sm:$0xf]
  %v23 = vld [vmem:[%s1 + $0xc] sm:$0xf]
  %v24 = vld [vmem:[%s1 + $0x10] sm:$0xf]
  %v25 = vld [vmem:[%s1 + $0x14] sm:$0xf]
  %v26 = vld [vmem:[%s1 + $0x18] sm:$0xf]
  %v27 = vld [vmem:[%s1 + $0x1c] sm:$0xf]
  %v28 = vld [vmem:[%s1 + $0x20] sm:$0xf]
  %v29 = vld [vmem:[%s1 + $0x24] sm:$0xf]
  %v30 = vld [vmem:[%s1 + $0x28] sm:$0xf]
  %v31 = vld [vmem:[%s1 + $0x2c] sm:$0xf]
  %v32 = vld [vmem:[%s1 + $0x30] sm:$0xf]
  %v33 = vld [vmem:[%s1 + $0x34] sm:$0xf]
  %v34 = vld [vmem:[%s1 + $0x38] sm:$0xf]
  %v35 = vld [vmem:[%s1 + $0x3c] sm:$0xf]
  %v36 = vld [vmem:[%s1 + $0x40] sm:$0xf]
  %v37 = vld [vmem:[%s1 + $0x44] sm:$0xf]
  %v38 = vld [vmem:[%s1 + $0x48] sm:$0xf]
  %v39 = vld [vmem:[%s1 + $0x4c] sm:$0xf]
  %v40 = vld [vmem:[%s1 + $0x50] sm:$0xf]
  %v41 = vld [vmem:[%s1 + $0x54] sm:$0xf]
  %v42 = vld [vmem:[%s1 + $0x58] sm:$0xf]
  %v43 = vld [vmem:[%s1 + $0x5c] sm:$0xf]
  %v44 = vld [vmem:[%s1 + $0x60] sm:$0xf]
  %v45 = vld [vmem:[%s1 + $0x64] sm:$0xf]
  %v46 = vld [vmem:[%s1 + $0x68] sm:$0xf]
  %v47 = vld [vmem:[%s1 + $0x6c] sm:$0xf]
  %v48 = vld [vmem:[%s1 + $0x70] sm:$0xf]
  %v49 = vld [vmem:[%s1 + $0x74] sm:$0xf]
  %v50 = vld [vmem:[%s1 + $0x78] sm:$0xf]
  %v51 = vld [vmem:[%s1 + $0x7c] sm:$0xf]
  %v52 = vld [vmem:[%s1 + $0x80] sm:$0xf]
  %v53 = vld [vmem:[%s1 + $0x84] sm:$0xf]
  %v54 = vld [vmem:[%s1 + $0x88] sm:$0xf]
  %v55 = vld [vmem:[%s1 + $0x8c] sm:$0xf]
  %v56 = vld [vmem:[%s1 + $0x90] sm:$0xf]
  %v57 = vld [vmem:[%s1 + $0x94] sm:$0xf]
  %v58 = vld [vmem:[%s1 + $0x98] sm:$0xf]
  %v59 = vld [vmem:[%s1 + $0x9c] sm:$0xf]
  %v60 = vld [vmem:[%s1 + $0xa0] sm:$0xf]
  %v61 = vld [vmem:[%s1 + $0xa4] sm:$0xf]
  %v62 = vld [vmem:[%s1 + $0xa8] sm:$0xf]
  %v63 = vld [vmem:[%s1 + $0xac] sm:$0xf]
  %v64 = vld [vmem:[%s1 + $0xb0] sm:$0xf]
  %v65 = vld [vmem:[%s1 + $0xb4] sm:$0xf]
  %v66 = vld [vmem:[%s1 + $0xb8] sm:$0xf]
  %v67 = vld [vmem:[%s1 + $0xbc] sm:$0xf]
  %v68 = vld [vmem:[%s1 + $0xc0] sm:$0xf]
  %v69 = vld [vmem:[%s1 + $0xc4] sm:$0xf]
  %v70 = vld [vmem:[%s1 + $0xc8] sm:$0xf]
  %v71 = vld [vmem:[%s1 + $0xcc] sm:$0xf]
  %v72 = vld [vmem:[%s1 + $0xd0] sm:$0xf]
  %v73 = vld [vmem:[%s1 + $0xd4] sm:$0xf]
  %v74 = vld [vmem:[%s1 + $0xd8] sm:$0xf]
  %v75 = vld [vmem:[%s1 + $0xdc] sm:$0xf]
  %v76 = vld [vmem:[%s1 + $0xe0] sm:$0xf]
  %v77 = vld [vmem:[%s1 + $0xe4] sm:$0xf]
  %v78 = vld [vmem:[%s1 + $0xe8] sm:$0xf]
  %v79 = vld [vmem:[%s1 + $0xec] sm:$0xf]
  %v80 = vld [vmem:[%s1 + $0xf0] sm:$0xf]
  %v81 = vld [vmem:[%s1 + $0xf4] sm:$0xf]
  %v82 = vld [vmem:[%s1 + $0xf8] sm:$0xf]
  %v83 = vld [vmem:[%s1 + $0xfc] sm:$0xf]
  %v84 = vld [vmem:[%s1 + $0x100] sm:$0xf]
  %v85 = vld [vmem:[%s1 + $0x104] sm:$0xf]
  %v86 = vld [vmem:[%s1 + $0x108] sm:$0xf]
  %v87 = vld [vmem:[%s1 + $0x10c] sm:$0xf]
  %v88 = vld [vmem:[%s1 + $0x110] sm:$0xf]
  %v89 = vld [vmem:[%s1 + $0x114] sm:$0xf]
  %v90 = vld [vmem:[%s1 + $0x118] sm:$0xf]
  %v91 = vld [vmem:[%s1 + $0x11c] sm:$0xf]
  %v92 = vld [vmem:[%s1 + $0x120] sm:$0xf]
  %v93 = vld [vmem:[%s1 + $0x124] sm:$0xf]
  %v94 = vld [vmem:[%s1 + $0x128] sm:$0xf]
  %v95 = vld [vmem:[%s1 + $0x12c] sm:$0xf]
  %v96 = vld [vmem:[%s1 + $0x130] sm:$0xf]
  %v97 = vld [vmem:[%s1 + $0x134] sm:$0xf]
  %v98 = vld [vmem:[%s1 + $0x138] sm:$0xf]
  %v99 = vld [vmem:[%s1 + $0x13c] sm:$0xf]
  %v100 = vld [vmem:[%s2] sm:$0x1]
  %v102 = vperm.slane %v100, 0
  %v110 = vunpack.c.l.b16 %v14
  %v111 = vunpack.c.h.b16 %v14
  %v112 = vunpack.c.l.b16 %v15
  %v113 = vunpack.c.h.b16 %v15
  %v114 = vunpack.c.l.b16 %v16
  %v115 = vunpack.c.l.b16 %v17
  %v116 = vunpack.c.h.b16 %v17
  %v117 = vunpack.c.l.b16 %v18
  %v118 = vunpack.c.h.b16 %v18
  %v119 = vunpack.c.l.b16 %v19
  %v120 = vpack.c.b16 %v115, %v110
  %v121 = vpack.c.b16 %v116, %v111
  %v122 = vpack.c.b16 %v117, %v112
  %v123 = vpack.c.b16 %v118, %v113
  %v124 = vpack.c.b16 %v119, %v114
  %v210 = vunpack.c.l.b16 %v20
  %v211 = vunpack.c.l.b16 %v21
  %v212 = vunpack.c.l.b16 %v22
  %v213 = vunpack.c.l.b16 %v23
  %v214 = vunpack.c.l.b16 %v24
  %v215 = vunpack.c.l.b16 %v25
  %v216 = vunpack.c.l.b16 %v26
  %v217 = vunpack.c.l.b16 %v27
  %v218 = vunpack.c.l.b16 %v28
  %v219 = vunpack.c.l.b16 %v29
  %v220 = vunpack.c.l.b16 %v30
  %v221 = vunpack.c.l.b16 %v31
  %v222 = vunpack.c.l.b16 %v32
  %v223 = vunpack.c.l.b16 %v33
  %v224 = vunpack.c.l.b16 %v34
  %v225 = vunpack.c.l.b16 %v35
  %v226 = vunpack.c.l.b16 %v36
  %v227 = vunpack.c.l.b16 %v37
  %v228 = vunpack.c.l.b16 %v38
  %v229 = vunpack.c.l.b16 %v39
  %v230 = vunpack.c.l.b16 %v40
  %v231 = vunpack.c.l.b16 %v41
  %v232 = vunpack.c.l.b16 %v42
  %v233 = vunpack.c.l.b16 %v43
  %v234 = vunpack.c.l.b16 %v44
  %v235 = vunpack.c.l.b16 %v45
  %v236 = vunpack.c.l.b16 %v46
  %v237 = vunpack.c.l.b16 %v47
  %v238 = vunpack.c.l.b16 %v48
  %v239 = vunpack.c.l.b16 %v49
  %v240 = vunpack.c.l.b16 %v50
  %v241 = vunpack.c.l.b16 %v51
  %v242 = vunpack.c.l.b16 %v52
  %v243 = vunpack.c.l.b16 %v53
  %v244 = vunpack.c.l.b16 %v54
  %v245 = vunpack.c.l.b16 %v55
  %v246 = vunpack.c.l.b16 %v56
  %v247 = vunpack.c.l.b16 %v57
  %v248 = vunpack.c.l.b16 %v58
  %v249 = vunpack.c.l.b16 %v59
  %v250 = vunpack.c.l.b16 %v60
  %v251 = vunpack.c.l.b16 %v61
  %v252 = vunpack.c.l.b16 %v62
  %v253 = vunpack.c.l.b16 %v63
  %v254 = vunpack.c.l.b16 %v64
  %v255 = vunpack.c.l.b16 %v65
  %v256 = vunpack.c.l.b16 %v66
  %v257 = vunpack.c.l.b16 %v67
  %v258 = vunpack.c.l.b16 %v68
  %v259 = vunpack.c.l.b16 %v69
  %v260 = vunpack.c.l.b16 %v70
  %v261 = vunpack.c.l.b16 %v71
  %v262 = vunpack.c.l.b16 %v72
  %v263 = vunpack.c.l.b16 %v73
  %v264 = vunpack.c.l.b16 %v74
  %v265 = vunpack.c.l.b16 %v75
  %v266 = vunpack.c.l.b16 %v76
  %v267 = vunpack.c.l.b16 %v77
  %v268 = vunpack.c.l.b16 %v78
  %v269 = vunpack.c.l.b16 %v79
  %v270 = vunpack.c.l.b16 %v80
  %v271 = vunpack.c.l.b16 %v81
  %v272 = vunpack.c.l.b16 %v82
  %v273 = vunpack.c.l.b16 %v83
  %v274 = vunpack.c.l.b16 %v84
  %v275 = vunpack.c.l.b16 %v85
  %v276 = vunpack.c.l.b16 %v86
  %v277 = vunpack.c.l.b16 %v87
  %v278 = vunpack.c.l.b16 %v88
  %v279 = vunpack.c.l.b16 %v89
  %v280 = vunpack.c.l.b16 %v90
  %v281 = vunpack.c.l.b16 %v91
  %v282 = vunpack.c.l.b16 %v92
  %v283 = vunpack.c.l.b16 %v93
  %v284 = vunpack.c.l.b16 %v94
  %v285 = vunpack.c.l.b16 %v95
  %v286 = vunpack.c.l.b16 %v96
  %v287 = vunpack.c.l.b16 %v97
  %v288 = vunpack.c.l.b16 %v98
  %v289 = vunpack.c.l.b16 %v99
  %v290 = vpack.c.b16 %v211, %v210
  %v291 = vpack.c.b16 %v213, %v212
  %v292 = vpack.c.b16 %v215, %v214
  %v293 = vpack.c.b16 %v217, %v216
  %v294 = vpack.c.b16 %v219, %v218
  %v295 = vpack.c.b16 %v221, %v220
  %v296 = vpack.c.b16 %v223, %v222
  %v297 = vpack.c.b16 %v225, %v224
  %v298 = vpack.c.b16 %v227, %v226
  %v299 = vpack.c.b16 %v229, %v228
  %v300 = vpack.c.b16 %v231, %v230
  %v301 = vpack.c.b16 %v233, %v232
  %v302 = vpack.c.b16 %v235, %v234
  %v303 = vpack.c.b16 %v237, %v236
  %v304 = vpack.c.b16 %v239, %v238
  %v305 = vpack.c.b16 %v241, %v240
  %v306 = vpack.c.b16 %v243, %v242
  %v307 = vpack.c.b16 %v245, %v244
  %v308 = vpack.c.b16 %v247, %v246
  %v309 = vpack.c.b16 %v249, %v248
  %v310 = vpack.c.b16 %v251, %v250
  %v311 = vpack.c.b16 %v253, %v252
  %v312 = vpack.c.b16 %v255, %v254
  %v313 = vpack.c.b16 %v257, %v256
  %v314 = vpack.c.b16 %v259, %v258
  %v315 = vpack.c.b16 %v261, %v260
  %v316 = vpack.c.b16 %v263, %v262
  %v317 = vpack.c.b16 %v265, %v264
  %v318 = vpack.c.b16 %v267, %v266
  %v319 = vpack.c.b16 %v269, %v268
  %v320 = vpack.c.b16 %v271, %v270
  %v321 = vpack.c.b16 %v273, %v272
  %v322 = vpack.c.b16 %v275, %v274
  %v323 = vpack.c.b16 %v277, %v276
  %v324 = vpack.c.b16 %v279, %v278
  %v325 = vpack.c.b16 %v281, %v280
  %v326 = vpack.c.b16 %v283, %v282
  %v327 = vpack.c.b16 %v285, %v284
  %v328 = vpack.c.b16 %v287, %v286
  %v329 = vpack.c.b16 %v289, %v288
  %370 = vmatpush.bf16.msra.mxu0 %v297
  %371 = vmatpush.bf16.msra.mxu0 %v296
  %372 = vmatpush.bf16.msra.mxu0 %v295
  %373 = vmatpush.bf16.msra.mxu0 %v294
  %374 = vmatpush.bf16.msra.mxu0 %v293
  %375 = vmatpush.bf16.msra.mxu0 %v292
  %376 = vmatpush.bf16.msra.mxu0 %v291
  %377 = vmatpush.bf16.msra.mxu0 %v290
  %378 = vmatmul.bf16.gmra.mxu0 %v120
  %v379 = vpop.f32.mrf.mxu0
  %v380 = vadd.f32 %v102, %v379
  %v381 = vpop.f32.mrf.mxu0
  %v382 = vadd.f32 %v102, %v381
  %383 = vdwg.mxu0
  %384 = vmatpush.bf16.msra.mxu0 %v305
  %385 = vmatpush.bf16.msra.mxu0 %v304
  %386 = vmatpush.bf16.msra.mxu0 %v303
  %387 = vmatpush.bf16.msra.mxu0 %v302
  %388 = vmatpush.bf16.msra.mxu0 %v301
  %389 = vmatpush.bf16.msra.mxu0 %v300
  %390 = vmatpush.bf16.msra.mxu0 %v299
  %391 = vmatpush.bf16.msra.mxu0 %v298
  %392 = vmatmul.bf16.gmra.mxu0 %v121
  %v393 = vpop.f32.mrf.mxu0
  %v394 = vadd.f32 %v380, %v393
  %v395 = vpop.f32.mrf.mxu0
  %v396 = vadd.f32 %v382, %v395
  %397 = vdwg.mxu0
  %398 = vmatpush.bf16.msra.mxu0 %v313
  %399 = vmatpush.bf16.msra.mxu0 %v312
  %400 = vmatpush.bf16.msra.mxu0 %v311
  %401 = vmatpush.bf16.msra.mxu0 %v310
  %402 = vmatpush.bf16.msra.mxu0 %v309
  %403 = vmatpush.bf16.msra.mxu0 %v308
  %404 = vmatpush.bf16.msra.mxu0 %v307
  %405 = vmatpush.bf16.msra.mxu0 %v306
  %406 = vmatmul.bf16.gmra.mxu0 %v122
  %v407 = vpop.f32.mrf.mxu0
  %v408 = vadd.f32 %v394, %v407
  %v409 = vpop.f32.mrf.mxu0
  %v410 = vadd.f32 %v396, %v409
  %411 = vdwg.mxu0
  %412 = vmatpush.bf16.msra.mxu0 %v321
  %413 = vmatpush.bf16.msra.mxu0 %v320
  %414 = vmatpush.bf16.msra.mxu0 %v319
  %415 = vmatpush.bf16.msra.mxu0 %v318
  %416 = vmatpush.bf16.msra.mxu0 %v317
  %417 = vmatpush.bf16.msra.mxu0 %v316
  %418 = vmatpush.bf16.msra.mxu0 %v315
  %419 = vmatpush.bf16.msra.mxu0 %v314
  %420 = vmatmul.bf16.gmra.mxu0 %v123
  %v421 = vpop.f32.mrf.mxu0
  %v422 = vadd.f32 %v408, %v421
  %v423 = vpop.f32.mrf.mxu0
  %v424 = vadd.f32 %v410, %v423
  %425 = vdwg.mxu0
  %426 = vmatpush.bf16.msra.mxu0 %v329
  %427 = vmatpush.bf16.msra.mxu0 %v328
  %428 = vmatpush.bf16.msra.mxu0 %v327
  %429 = vmatpush.bf16.msra.mxu0 %v326
  %430 = vmatpush.bf16.msra.mxu0 %v325
  %431 = vmatpush.bf16.msra.mxu0 %v324
  %432 = vmatpush.bf16.msra.mxu0 %v323
  %433 = vmatpush.bf16.msra.mxu0 %v322
  %434 = vmatmul.bf16.gmra.mxu0 %v124
  %v435 = vpop.f32.mrf.mxu0
  %v436 = vadd.f32 %v422, %v435
  %v437 = vpop.f32.mrf.mxu0
  %v438 = vadd.f32 %v424, %v437
  %439 = vdwg.mxu0
  %v440 = vmax.f32 %v436, 0.0
  %v441 = vmax.f32 %v438, 0.0
  %v442 = vpack.c.bf16 %v440, %v440
  %v443 = vpack.c.bf16 %v441, %v441
  %444 = vst [vmem:[%s3] sm:$0xf] %v442
  %445 = vst [vmem:[%s3 + $0x4] sm:$0xf] %v443
  // Predicated region
  $region14: #{dqn_forward.8} parent=0 // pred_check
    _
  $region15: #{dqn_forward.8} parent=0 // pred_check_branch
    %447 = sbr.rel (0) target = $region17
  $region16: #{dqn_forward.8} parent=0 // pred_region
    _
  $region17: #{dqn_forward.8} parent=0 // pred_fallthru
    _
  // Predicated region
  $region18: #{dqn_forward.8} parent=0 // pred_check
    _
  $region19: #{dqn_forward.8} parent=0 // pred_check_branch
    %449 = sbr.rel (0) target = $region21
  $region20: #{dqn_forward.8} parent=0 // pred_region
    _
  $region21: #{dqn_forward.8} parent=0 // pred_fallthru
    _

// kernel: dqn_forward.9
$region0: #{dqn_forward.9}
  #allocation0 [shape = 'u32[]', space=smem, size = 0x4, offset = 0x4, fixed_abs, tag = 'smem constant byte address 0x4 - core index']
  #allocation1 [shape = 'u32[72,128]{1,0:T(1,128)}', space=vmem, size = 0x9000, scoped, tag = 'internal scratch']
  %s0 = inlined_call_operand.vmem [shape: bf16[16,256], index: 0, kind: input, shape index: {}]
  %s1 = inlined_call_operand.vmem [shape: bf16[256,512], index: 1, kind: input, shape index: {}]
  %s2 = inlined_call_operand.vmem [shape: bf16[256,512], index: 2, kind: input, shape index: {}]
  %s3 = inlined_call_operand.vmem [shape: bf16[1,256], index: 3, kind: input, shape index: {}]
  %s4 = inlined_call_operand.vmem [shape: f32[1,512], index: 4, kind: input, shape index: {}]
  %s5 = inlined_call_operand.vmem [shape: f32[1,512], index: 5, kind: input, shape index: {}]
  %s6 = inlined_call_operand.vmem [shape: bf16[512,128], index: 6, kind: input, shape index: {}]
  %s7 = inlined_call_operand.vmem [shape: bf16[512,128], index: 7, kind: input, shape index: {}]
  %s8 = inlined_call_operand.vmem [shape: bf16[1,512], index: 8, kind: input, shape index: {}]
  %s9 = inlined_call_operand.vmem [shape: f32[1,128], index: 9, kind: input, shape index: {}]
  %s10 = inlined_call_operand.vmem [shape: f32[1,128], index: 10, kind: input, shape index: {}]
  %s11 = inlined_call_operand.vmem [shape: f32[16,128], index: 11, kind: output, shape index: {}]
  %s12 = sld [smem:[#allocation0]]
  $region54: #{dqn_forward.9} parent=0
    _
  %s14 = ssub.s32 1, %s12
  %s15 = scalar_select 0, %s14, %s12
  // Predicated region
  $region2: #{dqn_forward.9} parent=0 // pred_check
    _
  $region3: #{dqn_forward.9} parent=0 // pred_check_branch
    %17 = sbr.rel (0) target = $region5
  $region4: #{dqn_forward.9} parent=0 // pred_region
    _
  $region5: #{dqn_forward.9} parent=0 // pred_fallthru
    _
  // Predicated region
  $region6: #{dqn_forward.9} parent=0 // pred_check
    _
  $region7: #{dqn_forward.9} parent=0 // pred_check_branch
    %19 = sbr.rel (0) target = $region9
  $region8: #{dqn_forward.9} parent=0 // pred_region
    _
  $region9: #{dqn_forward.9} parent=0 // pred_fallthru
    _
  // Predicated region
  $region10: #{dqn_forward.9} parent=0 // pred_check
    _
  $region11: #{dqn_forward.9} parent=0 // pred_check_branch
    %21 = sbr.rel (0) target = $region13
  $region12: #{dqn_forward.9} parent=0 // pred_region
    _
  $region13: #{dqn_forward.9} parent=0 // pred_fallthru
    _
  // Predicated region
  $region14: #{dqn_forward.9} parent=0 // pred_check
    _
  $region15: #{dqn_forward.9} parent=0 // pred_check_branch
    %23 = sbr.rel (0) target = $region17
  $region16: #{dqn_forward.9} parent=0 // pred_region
    _
  $region17: #{dqn_forward.9} parent=0 // pred_fallthru
    _
  // Predicated region
  $region18: #{dqn_forward.9} parent=0 // pred_check
    _
  $region19: #{dqn_forward.9} parent=0 // pred_check_branch
    %25 = sbr.rel (0) target = $region21
  $region20: #{dqn_forward.9} parent=0 // pred_region
    _
  $region21: #{dqn_forward.9} parent=0 // pred_fallthru
    _
  // Predicated region
  $region22: #{dqn_forward.9} parent=0 // pred_check
    _
  $region23: #{dqn_forward.9} parent=0 // pred_check_branch
    %27 = sbr.rel (0) target = $region25
  $region24: #{dqn_forward.9} parent=0 // pred_region
    _
  $region25: #{dqn_forward.9} parent=0 // pred_fallthru
    _
  // Predicated region
  $region26: #{dqn_forward.9} parent=0 // pred_check
    _
  $region27: #{dqn_forward.9} parent=0 // pred_check_branch
    %29 = sbr.rel (0) target = $region29
  $region28: #{dqn_forward.9} parent=0 // pred_region
    _
  $region29: #{dqn_forward.9} parent=0 // pred_fallthru
    _
  // Predicated region
  $region30: #{dqn_forward.9} parent=0 // pred_check
    _
  $region31: #{dqn_forward.9} parent=0 // pred_check_branch
    %31 = sbr.rel (0) target = $region33
  $region32: #{dqn_forward.9} parent=0 // pred_region
    _
  $region33: #{dqn_forward.9} parent=0 // pred_fallthru
    _
  // Predicated region
  $region34: #{dqn_forward.9} parent=0 // pred_check
    _
  $region35: #{dqn_forward.9} parent=0 // pred_check_branch
    %33 = sbr.rel (0) target = $region37
  $region36: #{dqn_forward.9} parent=0 // pred_region
    _
  $region37: #{dqn_forward.9} parent=0 // pred_fallthru
    _
  // Predicated region
  $region38: #{dqn_forward.9} parent=0 // pred_check
    _
  $region39: #{dqn_forward.9} parent=0 // pred_check_branch
    %35 = sbr.rel (0) target = $region41
  $region40: #{dqn_forward.9} parent=0 // pred_region
    _
  $region41: #{dqn_forward.9} parent=0 // pred_fallthru
    _
  // Predicated region
  $region42: #{dqn_forward.9} parent=0 // pred_check
    _
  $region43: #{dqn_forward.9} parent=0 // pred_check_branch
    %37 = sbr.rel (0) target = $region45
  $region44: #{dqn_forward.9} parent=0 // pred_region
    _
  $region45: #{dqn_forward.9} parent=0 // pred_fallthru
    _
  %v38 = vld [vmem:[%s0] sm:$0xff]
  %v39 = vld [vmem:[%s0 + $0x8] sm:$0xff]
  %v40 = vld [vmem:[%s1] sm:$0xff]
  %v41 = vld [vmem:[%s1 + $0x8] sm:$0xff]
  %v42 = vld [vmem:[%s1 + $0x10] sm:$0xff]
  %v43 = vld [vmem:[%s1 + $0x18] sm:$0xff]
  %v44 = vld [vmem:[%s1 + $0x20] sm:$0xff]
  %v45 = vld [vmem:[%s1 + $0x28] sm:$0xff]
  %v46 = vld [vmem:[%s1 + $0x30] sm:$0xff]
  %v47 = vld [vmem:[%s1 + $0x38] sm:$0xff]
  %v48 = vld [vmem:[%s1 + $0x40] sm:$0xff]
  %v49 = vld [vmem:[%s1 + $0x48] sm:$0xff]
  %v50 = vld [vmem:[%s1 + $0x50] sm:$0xff]
  %v51 = vld [vmem:[%s1 + $0x58] sm:$0xff]
  %v52 = vld [vmem:[%s1 + $0x60] sm:$0xff]
  %v53 = vld [vmem:[%s1 + $0x68] sm:$0xff]
  %v54 = vld [vmem:[%s1 + $0x70] sm:$0xff]
  %v55 = vld [vmem:[%s1 + $0x78] sm:$0xff]
  %v56 = vld [vmem:[%s1 + $0x80] sm:$0xff]
  %v57 = vld [vmem:[%s1 + $0x88] sm:$0xff]
  %v58 = vld [vmem:[%s1 + $0x90] sm:$0xff]
  %v59 = vld [vmem:[%s1 + $0x98] sm:$0xff]
  %v60 = vld [vmem:[%s1 + $0xa0] sm:$0xff]
  %v61 = vld [vmem:[%s1 + $0xa8] sm:$0xff]
  %v62 = vld [vmem:[%s1 + $0xb0] sm:$0xff]
  %v63 = vld [vmem:[%s1 + $0xb8] sm:$0xff]
  %v64 = vld [vmem:[%s1 + $0xc0] sm:$0xff]
  %v65 = vld [vmem:[%s1 + $0xc8] sm:$0xff]
  %v66 = vld [vmem:[%s1 + $0xd0] sm:$0xff]
  %v67 = vld [vmem:[%s1 + $0xd8] sm:$0xff]
  %v68 = vld [vmem:[%s1 + $0xe0] sm:$0xff]
  %v69 = vld [vmem:[%s1 + $0xe8] sm:$0xff]
  %v70 = vld [vmem:[%s1 + $0xf0] sm:$0xff]
  %v71 = vld [vmem:[%s1 + $0xf8] sm:$0xff]
  %v72 = vld [vmem:[%s1 + $0x100] sm:$0xff]
  %v73 = vld [vmem:[%s1 + $0x108] sm:$0xff]
  %v74 = vld [vmem:[%s1 + $0x110] sm:$0xff]
  %v75 = vld [vmem:[%s1 + $0x118] sm:$0xff]
  %v76 = vld [vmem:[%s1 + $0x120] sm:$0xff]
  %v77 = vld [vmem:[%s1 + $0x128] sm:$0xff]
  %v78 = vld [vmem:[%s1 + $0x130] sm:$0xff]
  %v79 = vld [vmem:[%s1 + $0x138] sm:$0xff]
  %v80 = vld [vmem:[%s1 + $0x140] sm:$0xff]
  %v81 = vld [vmem:[%s1 + $0x148] sm:$0xff]
  %v82 = vld [vmem:[%s1 + $0x150] sm:$0xff]
  %v83 = vld [vmem:[%s1 + $0x158] sm:$0xff]
  %v84 = vld [vmem:[%s1 + $0x160] sm:$0xff]
  %v85 = vld [vmem:[%s1 + $0x168] sm:$0xff]
  %v86 = vld [vmem:[%s1 + $0x170] sm:$0xff]
  %v87 = vld [vmem:[%s1 + $0x178] sm:$0xff]
  %v88 = vld [vmem:[%s1 + $0x180] sm:$0xff]
  %v89 = vld [vmem:[%s1 + $0x188] sm:$0xff]
  %v90 = vld [vmem:[%s1 + $0x190] sm:$0xff]
  %v91 = vld [vmem:[%s1 + $0x198] sm:$0xff]
  %v92 = vld [vmem:[%s1 + $0x1a0] sm:$0xff]
  %v93 = vld [vmem:[%s1 + $0x1a8] sm:$0xff]
  %v94 = vld [vmem:[%s1 + $0x1b0] sm:$0xff]
  %v95 = vld [vmem:[%s1 + $0x1b8] sm:$0xff]
  %v96 = vld [vmem:[%s1 + $0x1c0] sm:$0xff]
  %v97 = vld [vmem:[%s1 + $0x1c8] sm:$0xff]
  %v98 = vld [vmem:[%s1 + $0x1d0] sm:$0xff]
  %v99 = vld [vmem:[%s1 + $0x1d8] sm:$0xff]
  %v100 = vld [vmem:[%s1 + $0x1e0] sm:$0xff]
  %v101 = vld [vmem:[%s1 + $0x1e8] sm:$0xff]
  %v102 = vld [vmem:[%s1 + $0x1f0] sm:$0xff]
  %v103 = vld [vmem:[%s1 + $0x1f8] sm:$0xff]
  %v104 = vld [vmem:[%s3] sm:$0x3]
  %106 = vst [vmem:[#allocation1] ss:$9 sm:$0xff] %v104
  %v107 = vld [vmem:[#allocation1] sm:$0xff]
  %v108 = vld [vmem:[#allocation1 + $0x9] sm:$0xff]
  %v109 = vpack.i.b16 %v107, %v107
  %v111 = vperm.slane %v109, 0
  %v112 = vpack.i.b16 %v108, %v108
  %v114 = vperm.slane %v112, 0
  %v115 = vunpack.c.l.bf16 %v38
  %v116 = vunpack.c.h.bf16 %v38
  %v117 = vunpack.c.l.bf16 %v39
  %v118 = vunpack.c.h.bf16 %v39
  %v119 = vunpack.c.l.bf16 %v111
  %v120 = vunpack.c.l.bf16 %v114
  %v121 = vmul.f32 %v115, %v119
  %v122 = vmul.f32 %v116, %v120
  %v123 = vmul.f32 %v117, %v119
  %v124 = vmul.f32 %v118, %v120
  %v125 = vpack.c.bf16 %v123, %v121
  %v126 = vpack.c.bf16 %v124, %v122
  %v127 = vld [vmem:[%s2] sm:$0xff]
  %v128 = vld [vmem:[%s2 + $0x8] sm:$0xff]
  %v129 = vld [vmem:[%s2 + $0x10] sm:$0xff]
  %v130 = vld [vmem:[%s2 + $0x18] sm:$0xff]
  %v131 = vld [vmem:[%s2 + $0x20] sm:$0xff]
  %v132 = vld [vmem:[%s2 + $0x28] sm:$0xff]
  %v133 = vld [vmem:[%s2 + $0x30] sm:$0xff]
  %v134 = vld [vmem:[%s2 + $0x38] sm:$0xff]
  %v135 = vld [vmem:[%s2 + $0x40] sm:$0xff]
  %v136 = vld [vmem:[%s2 + $0x48] sm:$0xff]
  %v137 = vld [vmem:[%s2 + $0x50] sm:$0xff]
  %v138 = vld [vmem:[%s2 + $0x58] sm:$0xff]
  %v139 = vld [vmem:[%s2 + $0x60] sm:$0xff]
  %v140 = vld [vmem:[%s2 + $0x68] sm:$0xff]
  %v141 = vld [vmem:[%s2 + $0x70] sm:$0xff]
  %v142 = vld [vmem:[%s2 + $0x78] sm:$0xff]
  %v143 = vld [vmem:[%s2 + $0x80] sm:$0xff]
  %v144 = vld [vmem:[%s2 + $0x88] sm:$0xff]
  %v145 = vld [vmem:[%s2 + $0x90] sm:$0xff]
  %v146 = vld [vmem:[%s2 + $0x98] sm:$0xff]
  %v147 = vld [vmem:[%s2 + $0xa0] sm:$0xff]
  %v148 = vld [vmem:[%s2 + $0xa8] sm:$0xff]
  %v149 = vld [vmem:[%s2 + $0xb0] sm:$0xff]
  %v150 = vld [vmem:[%s2 + $0xb8] sm:$0xff]
  %v151 = vld [vmem:[%s2 + $0xc0] sm:$0xff]
  %v152 = vld [vmem:[%s2 + $0xc8] sm:$0xff]
  %v153 = vld [vmem:[%s2 + $0xd0] sm:$0xff]
  %v154 = vld [vmem:[%s2 + $0xd8] sm:$0xff]
  %v155 = vld [vmem:[%s2 + $0xe0] sm:$0xff]
  %v156 = vld [vmem:[%s2 + $0xe8] sm:$0xff]
  %v157 = vld [vmem:[%s2 + $0xf0] sm:$0xff]
  %v158 = vld [vmem:[%s2 + $0xf8] sm:$0xff]
  %v159 = vld [vmem:[%s2 + $0x100] sm:$0xff]
  %v160 = vld [vmem:[%s2 + $0x108] sm:$0xff]
  %v161 = vld [vmem:[%s2 + $0x110] sm:$0xff]
  %v162 = vld [vmem:[%s2 + $0x118] sm:$0xff]
  %v163 = vld [vmem:[%s2 + $0x120] sm:$0xff]
  %v164 = vld [vmem:[%s2 + $0x128] sm:$0xff]
  %v165 = vld [vmem:[%s2 + $0x130] sm:$0xff]
  %v166 = vld [vmem:[%s2 + $0x138] sm:$0xff]
  %v167 = vld [vmem:[%s2 + $0x140] sm:$0xff]
  %v168 = vld [vmem:[%s2 + $0x148] sm:$0xff]
  %v169 = vld [vmem:[%s2 + $0x150] sm:$0xff]
  %v170 = vld [vmem:[%s2 + $0x158] sm:$0xff]
  %v171 = vld [vmem:[%s2 + $0x160] sm:$0xff]
  %v172 = vld [vmem:[%s2 + $0x168] sm:$0xff]
  %v173 = vld [vmem:[%s2 + $0x170] sm:$0xff]
  %v174 = vld [vmem:[%s2 + $0x178] sm:$0xff]
  %v175 = vld [vmem:[%s2 + $0x180] sm:$0xff]
  %v176 = vld [vmem:[%s2 + $0x188] sm:$0xff]
  %v177 = vld [vmem:[%s2 + $0x190] sm:$0xff]
  %v178 = vld [vmem:[%s2 + $0x198] sm:$0xff]
  %v179 = vld [vmem:[%s2 + $0x1a0] sm:$0xff]
  %v180 = vld [vmem:[%s2 + $0x1a8] sm:$0xff]
  %v181 = vld [vmem:[%s2 + $0x1b0] sm:$0xff]
  %v182 = vld [vmem:[%s2 + $0x1b8] sm:$0xff]
  %v183 = vld [vmem:[%s2 + $0x1c0] sm:$0xff]
  %v184 = vld [vmem:[%s2 + $0x1c8] sm:$0xff]
  %v185 = vld [vmem:[%s2 + $0x1d0] sm:$0xff]
  %v186 = vld [vmem:[%s2 + $0x1d8] sm:$0xff]
  %v187 = vld [vmem:[%s2 + $0x1e0] sm:$0xff]
  %v188 = vld [vmem:[%s2 + $0x1e8] sm:$0xff]
  %v189 = vld [vmem:[%s2 + $0x1f0] sm:$0xff]
  %v190 = vld [vmem:[%s2 + $0x1f8] sm:$0xff]
  %v255 = vunpack.c.l.b16 %v127
  %v256 = vunpack.c.h.b16 %v127
  %v257 = vunpack.c.l.b16 %v128
  %v258 = vunpack.c.h.b16 %v128
  %v259 = vunpack.c.l.b16 %v129
  %v260 = vunpack.c.h.b16 %v129
  %v261 = vunpack.c.l.b16 %v130
  %v262 = vunpack.c.h.b16 %v130
  %v263 = vunpack.c.l.b16 %v131
  %v264 = vunpack.c.h.b16 %v131
  %v265 = vunpack.c.l.b16 %v132
  %v266 = vunpack.c.h.b16 %v132
  %v267 = vunpack.c.l.b16 %v133
  %v268 = vunpack.c.h.b16 %v133
  %v269 = vunpack.c.l.b16 %v134
  %v270 = vunpack.c.h.b16 %v134
  %v271 = vunpack.c.l.b16 %v135
  %v272 = vunpack.c.h.b16 %v135
  %v273 = vunpack.c.l.b16 %v136
  %v274 = vunpack.c.h.b16 %v136
  %v275 = vunpack.c.l.b16 %v137
  %v276 = vunpack.c.h.b16 %v137
  %v277 = vunpack.c.l.b16 %v138
  %v278 = vunpack.c.h.b16 %v138
  %v279 = vunpack.c.l.b16 %v139
  %v280 = vunpack.c.h.b16 %v139
  %v281 = vunpack.c.l.b16 %v140
  %v282 = vunpack.c.h.b16 %v140
  %v283 = vunpack.c.l.b16 %v141
  %v284 = vunpack.c.h.b16 %v141
  %v285 = vunpack.c.l.b16 %v142
  %v286 = vunpack.c.h.b16 %v142
  %v287 = vunpack.c.l.b16 %v143
  %v288 = vunpack.c.h.b16 %v143
  %v289 = vunpack.c.l.b16 %v144
  %v290 = vunpack.c.h.b16 %v144
  %v291 = vunpack.c.l.b16 %v145
  %v292 = vunpack.c.h.b16 %v145
  %v293 = vunpack.c.l.b16 %v146
  %v294 = vunpack.c.h.b16 %v146
  %v295 = vunpack.c.l.b16 %v147
  %v296 = vunpack.c.h.b16 %v147
  %v297 = vunpack.c.l.b16 %v148
  %v298 = vunpack.c.h.b16 %v148
  %v299 = vunpack.c.l.b16 %v149
  %v300 = vunpack.c.h.b16 %v149
  %v301 = vunpack.c.l.b16 %v150
  %v302 = vunpack.c.h.b16 %v150
  %v303 = vunpack.c.l.b16 %v151
  %v304 = vunpack.c.h.b16 %v151
  %v305 = vunpack.c.l.b16 %v152
  %v306 = vunpack.c.h.b16 %v152
  %v307 = vunpack.c.l.b16 %v153
  %v308 = vunpack.c.h.b16 %v153
  %v309 = vunpack.c.l.b16 %v154
  %v310 = vunpack.c.h.b16 %v154
  %v311 = vunpack.c.l.b16 %v155
  %v312 = vunpack.c.h.b16 %v155
  %v313 = vunpack.c.l.b16 %v156
  %v314 = vunpack.c.h.b16 %v156
  %v315 = vunpack.c.l.b16 %v157
  %v316 = vunpack.c.h.b16 %v157
  %v317 = vunpack.c.l.b16 %v158
  %v318 = vunpack.c.h.b16 %v158
  %v319 = vunpack.c.l.b16 %v159
  %v320 = vunpack.c.h.b16 %v159
  %v321 = vunpack.c.l.b16 %v160
  %v322 = vunpack.c.h.b16 %v160
  %v323 = vunpack.c.l.b16 %v161
  %v324 = vunpack.c.h.b16 %v161
  %v325 = vunpack.c.l.b16 %v162
  %v326 = vunpack.c.h.b16 %v162
  %v327 = vunpack.c.l.b16 %v163
  %v328 = vunpack.c.h.b16 %v163
  %v329 = vunpack.c.l.b16 %v164
  %v330 = vunpack.c.h.b16 %v164
  %v331 = vunpack.c.l.b16 %v165
  %v332 = vunpack.c.h.b16 %v165
  %v333 = vunpack.c.l.b16 %v166
  %v334 = vunpack.c.h.b16 %v166
  %v335 = vunpack.c.l.b16 %v167
  %v336 = vunpack.c.h.b16 %v167
  %v337 = vunpack.c.l.b16 %v168
  %v338 = vunpack.c.h.b16 %v168
  %v339 = vunpack.c.l.b16 %v169
  %v340 = vunpack.c.h.b16 %v169
  %v341 = vunpack.c.l.b16 %v170
  %v342 = vunpack.c.h.b16 %v170
  %v343 = vunpack.c.l.b16 %v171
  %v344 = vunpack.c.h.b16 %v171
  %v345 = vunpack.c.l.b16 %v172
  %v346 = vunpack.c.h.b16 %v172
  %v347 = vunpack.c.l.b16 %v173
  %v348 = vunpack.c.h.b16 %v173
  %v349 = vunpack.c.l.b16 %v174
  %v350 = vunpack.c.h.b16 %v174
  %v351 = vunpack.c.l.b16 %v175
  %v352 = vunpack.c.h.b16 %v175
  %v353 = vunpack.c.l.b16 %v176
  %v354 = vunpack.c.h.b16 %v176
  %v355 = vunpack.c.l.b16 %v177
  %v356 = vunpack.c.h.b16 %v177
  %v357 = vunpack.c.l.b16 %v178
  %v358 = vunpack.c.h.b16 %v178
  %v359 = vunpack.c.l.b16 %v179
  %v360 = vunpack.c.h.b16 %v179
  %v361 = vunpack.c.l.b16 %v180
  %v362 = vunpack.c.h.b16 %v180
  %v363 = vunpack.c.l.b16 %v181
  %v364 = vunpack.c.h.b16 %v181
  %v365 = vunpack.c.l.b16 %v182
  %v366 = vunpack.c.h.b16 %v182
  %v367 = vunpack.c.l.b16 %v183
  %v368 = vunpack.c.h.b16 %v183
  %v369 = vunpack.c.l.b16 %v184
  %v370 = vunpack.c.h.b16 %v184
  %v371 = vunpack.c.l.b16 %v185
  %v372 = vunpack.c.h.b16 %v185
  %v373 = vunpack.c.l.b16 %v186
  %v374 = vunpack.c.h.b16 %v186
  %v375 = vunpack.c.l.b16 %v187
  %v376 = vunpack.c.h.b16 %v187
  %v377 = vunpack.c.l.b16 %v188
  %v378 = vunpack.c.h.b16 %v188
  %v379 = vunpack.c.l.b16 %v189
  %v380 = vunpack.c.h.b16 %v189
  %v381 = vunpack.c.l.b16 %v190
  %v382 = vunpack.c.h.b16 %v190
  %v383 = vpack.c.b16 %v259, %v255
  %v384 = vpack.c.b16 %v260, %v256
  %v385 = vpack.c.b16 %v261, %v257
  %v386 = vpack.c.b16 %v262, %v258
  %v387 = vpack.c.b16 %v267, %v263
  %v388 = vpack.c.b16 %v268, %v264
  %v389 = vpack.c.b16 %v269, %v265
  %v390 = vpack.c.b16 %v270, %v266
  %v391 = vpack.c.b16 %v275, %v271
  %v392 = vpack.c.b16 %v276, %v272
  %v393 = vpack.c.b16 %v277, %v273
  %v394 = vpack.c.b16 %v278, %v274
  %v395 = vpack.c.b16 %v283, %v279
  %v396 = vpack.c.b16 %v284, %v280
  %v397 = vpack.c.b16 %v285, %v281
  %v398 = vpack.c.b16 %v286, %v282
  %v399 = vpack.c.b16 %v291, %v287
  %v400 = vpack.c.b16 %v292, %v288
  %v401 = vpack.c.b16 %v293, %v289
  %v402 = vpack.c.b16 %v294, %v290
  %v403 = vpack.c.b16 %v299, %v295
  %v404 = vpack.c.b16 %v300, %v296
  %v405 = vpack.c.b16 %v301, %v297
  %v406 = vpack.c.b16 %v302, %v298
  %v407 = vpack.c.b16 %v307, %v303
  %v408 = vpack.c.b16 %v308, %v304
  %v409 = vpack.c.b16 %v309, %v305
  %v410 = vpack.c.b16 %v310, %v306
  %v411 = vpack.c.b16 %v315, %v311
  %v412 = vpack.c.b16 %v316, %v312
  %v413 = vpack.c.b16 %v317, %v313
  %v414 = vpack.c.b16 %v318, %v314
  %v415 = vpack.c.b16 %v323, %v319
  %v416 = vpack.c.b16 %v324, %v320
  %v417 = vpack.c.b16 %v325, %v321
  %v418 = vpack.c.b16 %v326, %v322
  %v419 = vpack.c.b16 %v331, %v327
  %v420 = vpack.c.b16 %v332, %v328
  %v421 = vpack.c.b16 %v333, %v329
  %v422 = vpack.c.b16 %v334, %v330
  %v423 = vpack.c.b16 %v339, %v335
  %v424 = vpack.c.b16 %v340, %v336
  %v425 = vpack.c.b16 %v341, %v337
  %v426 = vpack.c.b16 %v342, %v338
  %v427 = vpack.c.b16 %v347, %v343
  %v428 = vpack.c.b16 %v348, %v344
  %v429 = vpack.c.b16 %v349, %v345
  %v430 = vpack.c.b16 %v350, %v346
  %v431 = vpack.c.b16 %v355, %v351
  %v432 = vpack.c.b16 %v356, %v352
  %v433 = vpack.c.b16 %v357, %v353
  %v434 = vpack.c.b16 %v358, %v354
  %v435 = vpack.c.b16 %v363, %v359
  %v436 = vpack.c.b16 %v364, %v360
  %v437 = vpack.c.b16 %v365, %v361
  %v438 = vpack.c.b16 %v366, %v362
  %v439 = vpack.c.b16 %v371, %v367
  %v440 = vpack.c.b16 %v372, %v368
  %v441 = vpack.c.b16 %v373, %v369
  %v442 = vpack.c.b16 %v374, %v370
  %v443 = vpack.c.b16 %v379, %v375
  %v444 = vpack.c.b16 %v380, %v376
  %v445 = vpack.c.b16 %v381, %v377
  %v446 = vpack.c.b16 %v382, %v378
  %511 = vmatpush.bf16.msra.mxu0 %v411
  %512 = vmatpush.bf16.msra.mxu0 %v407
  %513 = vmatpush.bf16.msra.mxu0 %v403
  %514 = vmatpush.bf16.msra.mxu0 %v399
  %515 = vmatpush.bf16.msra.mxu0 %v395
  %516 = vmatpush.bf16.msra.mxu0 %v391
  %517 = vmatpush.bf16.msra.mxu0 %v387
  %518 = vmatpush.bf16.msra.mxu0 %v383
  %519 = vmatmul.bf16.gmra.mxu0 %v125
  %v520 = vpop.f32.mrf.mxu0
  %v521 = vadd.f32 0.0, %v520
  %v522 = vpop.f32.mrf.mxu0
  %v523 = vadd.f32 0.0, %v522
  %524 = vdwg.mxu0
  %525 = vmatpush.bf16.msra.mxu0 %v443
  %526 = vmatpush.bf16.msra.mxu0 %v439
  %527 = vmatpush.bf16.msra.mxu0 %v435
  %528 = vmatpush.bf16.msra.mxu0 %v431
  %529 = vmatpush.bf16.msra.mxu0 %v427
  %530 = vmatpush.bf16.msra.mxu0 %v423
  %531 = vmatpush.bf16.msra.mxu0 %v419
  %532 = vmatpush.bf16.msra.mxu0 %v415
  %533 = vmatmul.bf16.gmra.mxu0 %v126
  %v534 = vpop.f32.mrf.mxu0
  %v535 = vadd.f32 %v521, %v534
  %v536 = vpop.f32.mrf.mxu0
  %v537 = vadd.f32 %v523, %v536
  %538 = vdwg.mxu0
  %539 = vmatpush.bf16.msra.mxu0 %v412
  %540 = vmatpush.bf16.msra.mxu0 %v408
  %541 = vmatpush.bf16.msra.mxu0 %v404
  %542 = vmatpush.bf16.msra.mxu0 %v400
  %543 = vmatpush.bf16.msra.mxu0 %v396
  %544 = vmatpush.bf16.msra.mxu0 %v392
  %545 = vmatpush.bf16.msra.mxu0 %v388
  %546 = vmatpush.bf16.msra.mxu0 %v384
  %547 = vmatmul.bf16.gmra.mxu0 %v125
  %v548 = vpop.f32.mrf.mxu0
  %v549 = vadd.f32 0.0, %v548
  %v550 = vpop.f32.mrf.mxu0
  %v551 = vadd.f32 0.0, %v550
  %552 = vdwg.mxu0
  %553 = vmatpush.bf16.msra.mxu0 %v444
  %554 = vmatpush.bf16.msra.mxu0 %v440
  %555 = vmatpush.bf16.msra.mxu0 %v436
  %556 = vmatpush.bf16.msra.mxu0 %v432
  %557 = vmatpush.bf16.msra.mxu0 %v428
  %558 = vmatpush.bf16.msra.mxu0 %v424
  %559 = vmatpush.bf16.msra.mxu0 %v420
  %560 = vmatpush.bf16.msra.mxu0 %v416
  %561 = vmatmul.bf16.gmra.mxu0 %v126
  %v562 = vpop.f32.mrf.mxu0
  %v563 = vadd.f32 %v549, %v562
  %v564 = vpop.f32.mrf.mxu0
  %v565 = vadd.f32 %v551, %v564
  %566 = vdwg.mxu0
  %567 = vmatpush.bf16.msra.mxu0 %v413
  %568 = vmatpush.bf16.msra.mxu0 %v409
  %569 = vmatpush.bf16.msra.mxu0 %v405
  %570 = vmatpush.bf16.msra.mxu0 %v401
  %571 = vmatpush.bf16.msra.mxu0 %v397
  %572 = vmatpush.bf16.msra.mxu0 %v393
  %573 = vmatpush.bf16.msra.mxu0 %v389
  %574 = vmatpush.bf16.msra.mxu0 %v385
  %575 = vmatmul.bf16.gmra.mxu0 %v125
  %v576 = vpop.f32.mrf.mxu0
  %v577 = vadd.f32 0.0, %v576
  %v578 = vpop.f32.mrf.mxu0
  %v579 = vadd.f32 0.0, %v578
  %580 = vdwg.mxu0
  %581 = vmatpush.bf16.msra.mxu0 %v445
  %582 = vmatpush.bf16.msra.mxu0 %v441
  %583 = vmatpush.bf16.msra.mxu0 %v437
  %584 = vmatpush.bf16.msra.mxu0 %v433
  %585 = vmatpush.bf16.msra.mxu0 %v429
  %586 = vmatpush.bf16.msra.mxu0 %v425
  %587 = vmatpush.bf16.msra.mxu0 %v421
  %588 = vmatpush.bf16.msra.mxu0 %v417
  %589 = vmatmul.bf16.gmra.mxu0 %v126
  %v590 = vpop.f32.mrf.mxu0
  %v591 = vadd.f32 %v577, %v590
  %v592 = vpop.f32.mrf.mxu0
  %v593 = vadd.f32 %v579, %v592
  %594 = vdwg.mxu0
  %595 = vmatpush.bf16.msra.mxu0 %v414
  %596 = vmatpush.bf16.msra.mxu0 %v410
  %597 = vmatpush.bf16.msra.mxu0 %v406
  %598 = vmatpush.bf16.msra.mxu0 %v402
  %599 = vmatpush.bf16.msra.mxu0 %v398
  %600 = vmatpush.bf16.msra.mxu0 %v394
  %601 = vmatpush.bf16.msra.mxu0 %v390
  %602 = vmatpush.bf16.msra.mxu0 %v386
  %603 = vmatmul.bf16.gmra.mxu0 %v125
  %v604 = vpop.f32.mrf.mxu0
  %v605 = vadd.f32 0.0, %v604
  %v606 = vpop.f32.mrf.mxu0
  %v607 = vadd.f32 0.0, %v606
  %608 = vdwg.mxu0
  %609 = vmatpush.bf16.msra.mxu0 %v446
  %610 = vmatpush.bf16.msra.mxu0 %v442
  %611 = vmatpush.bf16.msra.mxu0 %v438
  %612 = vmatpush.bf16.msra.mxu0 %v434
  %613 = vmatpush.bf16.msra.mxu0 %v430
  %614 = vmatpush.bf16.msra.mxu0 %v426
  %615 = vmatpush.bf16.msra.mxu0 %v422
  %616 = vmatpush.bf16.msra.mxu0 %v418
  %617 = vmatmul.bf16.gmra.mxu0 %v126
  %v618 = vpop.f32.mrf.mxu0
  %v619 = vadd.f32 %v605, %v618
  %v620 = vpop.f32.mrf.mxu0
  %v621 = vadd.f32 %v607, %v620
  %622 = vdwg.mxu0
  %v623 = vld [vmem:[%s4] sm:$0xf]
  %v625 = vperm.slane %v623, 0
  %v626 = vperm.slane %v623, 1
  %v627 = vperm.slane %v623, 2
  %v628 = vperm.slane %v623, 3
  %v633 = vmul.f32 %v535, %v625
  %v634 = vmul.f32 %v563, %v626
  %v635 = vmul.f32 %v591, %v627
  %v636 = vmul.f32 %v619, %v628
  %v637 = vmul.f32 %v537, %v625
  %v638 = vmul.f32 %v565, %v626
  %v639 = vmul.f32 %v593, %v627
  %v640 = vmul.f32 %v621, %v628
  %v643 = vunpack.c.l.b16 %v38
  %v644 = vunpack.c.h.b16 %v38
  %v645 = vunpack.c.l.b16 %v39
  %v646 = vunpack.c.h.b16 %v39
  %v647 = vpack.c.b16 %v645, %v643
  %v648 = vpack.c.b16 %v646, %v644
  %v715 = vunpack.c.l.b16 %v40
  %v716 = vunpack.c.h.b16 %v40
  %v717 = vunpack.c.l.b16 %v41
  %v718 = vunpack.c.h.b16 %v41
  %v719 = vunpack.c.l.b16 %v42
  %v720 = vunpack.c.h.b16 %v42
  %v721 = vunpack.c.l.b16 %v43
  %v722 = vunpack.c.h.b16 %v43
  %v723 = vunpack.c.l.b16 %v44
  %v724 = vunpack.c.h.b16 %v44
  %v725 = vunpack.c.l.b16 %v45
  %v726 = vunpack.c.h.b16 %v45
  %v727 = vunpack.c.l.b16 %v46
  %v728 = vunpack.c.h.b16 %v46
  %v729 = vunpack.c.l.b16 %v47
  %v730 = vunpack.c.h.b16 %v47
  %v731 = vunpack.c.l.b16 %v48
  %v732 = vunpack.c.h.b16 %v48
  %v733 = vunpack.c.l.b16 %v49
  %v734 = vunpack.c.h.b16 %v49
  %v735 = vunpack.c.l.b16 %v50
  %v736 = vunpack.c.h.b16 %v50
  %v737 = vunpack.c.l.b16 %v51
  %v738 = vunpack.c.h.b16 %v51
  %v739 = vunpack.c.l.b16 %v52
  %v740 = vunpack.c.h.b16 %v52
  %v741 = vunpack.c.l.b16 %v53
  %v742 = vunpack.c.h.b16 %v53
  %v743 = vunpack.c.l.b16 %v54
  %v744 = vunpack.c.h.b16 %v54
  %v745 = vunpack.c.l.b16 %v55
  %v746 = vunpack.c.h.b16 %v55
  %v747 = vunpack.c.l.b16 %v56
  %v748 = vunpack.c.h.b16 %v56
  %v749 = vunpack.c.l.b16 %v57
  %v750 = vunpack.c.h.b16 %v57
  %v751 = vunpack.c.l.b16 %v58
  %v752 = vunpack.c.h.b16 %v58
  %v753 = vunpack.c.l.b16 %v59
  %v754 = vunpack.c.h.b16 %v59
  %v755 = vunpack.c.l.b16 %v60
  %v756 = vunpack.c.h.b16 %v60
  %v757 = vunpack.c.l.b16 %v61
  %v758 = vunpack.c.h.b16 %v61
  %v759 = vunpack.c.l.b16 %v62
  %v760 = vunpack.c.h.b16 %v62
  %v761 = vunpack.c.l.b16 %v63
  %v762 = vunpack.c.h.b16 %v63
  %v763 = vunpack.c.l.b16 %v64
  %v764 = vunpack.c.h.b16 %v64
  %v765 = vunpack.c.l.b16 %v65
  %v766 = vunpack.c.h.b16 %v65
  %v767 = vunpack.c.l.b16 %v66
  %v768 = vunpack.c.h.b16 %v66
  %v769 = vunpack.c.l.b16 %v67
  %v770 = vunpack.c.h.b16 %v67
  %v771 = vunpack.c.l.b16 %v68
  %v772 = vunpack.c.h.b16 %v68
  %v773 = vunpack.c.l.b16 %v69
  %v774 = vunpack.c.h.b16 %v69
  %v775 = vunpack.c.l.b16 %v70
  %v776 = vunpack.c.h.b16 %v70
  %v777 = vunpack.c.l.b16 %v71
  %v778 = vunpack.c.h.b16 %v71
  %v779 = vunpack.c.l.b16 %v72
  %v780 = vunpack.c.h.b16 %v72
  %v781 = vunpack.c.l.b16 %v73
  %v782 = vunpack.c.h.b16 %v73
  %v783 = vunpack.c.l.b16 %v74
  %v784 = vunpack.c.h.b16 %v74
  %v785 = vunpack.c.l.b16 %v75
  %v786 = vunpack.c.h.b16 %v75
  %v787 = vunpack.c.l.b16 %v76
  %v788 = vunpack.c.h.b16 %v76
  %v789 = vunpack.c.l.b16 %v77
  %v790 = vunpack.c.h.b16 %v77
  %v791 = vunpack.c.l.b16 %v78
  %v792 = vunpack.c.h.b16 %v78
  %v793 = vunpack.c.l.b16 %v79
  %v794 = vunpack.c.h.b16 %v79
  %v795 = vunpack.c.l.b16 %v80
  %v796 = vunpack.c.h.b16 %v80
  %v797 = vunpack.c.l.b16 %v81
  %v798 = vunpack.c.h.b16 %v81
  %v799 = vunpack.c.l.b16 %v82
  %v800 = vunpack.c.h.b16 %v82
  %v801 = vunpack.c.l.b16 %v83
  %v802 = vunpack.c.h.b16 %v83
  %v803 = vunpack.c.l.b16 %v84
  %v804 = vunpack.c.h.b16 %v84
  %v805 = vunpack.c.l.b16 %v85
  %v806 = vunpack.c.h.b16 %v85
  %v807 = vunpack.c.l.b16 %v86
  %v808 = vunpack.c.h.b16 %v86
  %v809 = vunpack.c.l.b16 %v87
  %v810 = vunpack.c.h.b16 %v87
  %v811 = vunpack.c.l.b16 %v88
  %v812 = vunpack.c.h.b16 %v88
  %v813 = vunpack.c.l.b16 %v89
  %v814 = vunpack.c.h.b16 %v89
  %v815 = vunpack.c.l.b16 %v90
  %v816 = vunpack.c.h.b16 %v90
  %v817 = vunpack.c.l.b16 %v91
  %v818 = vunpack.c.h.b16 %v91
  %v819 = vunpack.c.l.b16 %v92
  %v820 = vunpack.c.h.b16 %v92
  %v821 = vunpack.c.l.b16 %v93
  %v822 = vunpack.c.h.b16 %v93
  %v823 = vunpack.c.l.b16 %v94
  %v824 = vunpack.c.h.b16 %v94
  %v825 = vunpack.c.l.b16 %v95
  %v826 = vunpack.c.h.b16 %v95
  %v827 = vunpack.c.l.b16 %v96
  %v828 = vunpack.c.h.b16 %v96
  %v829 = vunpack.c.l.b16 %v97
  %v830 = vunpack.c.h.b16 %v97
  %v831 = vunpack.c.l.b16 %v98
  %v832 = vunpack.c.h.b16 %v98
  %v833 = vunpack.c.l.b16 %v99
  %v834 = vunpack.c.h.b16 %v99
  %v835 = vunpack.c.l.b16 %v100
  %v836 = vunpack.c.h.b16 %v100
  %v837 = vunpack.c.l.b16 %v101
  %v838 = vunpack.c.h.b16 %v101
  %v839 = vunpack.c.l.b16 %v102
  %v840 = vunpack.c.h.b16 %v102
  %v841 = vunpack.c.l.b16 %v103
  %v842 = vunpack.c.h.b16 %v103
  %v843 = vpack.c.b16 %v719, %v715
  %v844 = vpack.c.b16 %v720, %v716
  %v845 = vpack.c.b16 %v721, %v717
  %v846 = vpack.c.b16 %v722, %v718
  %v847 = vpack.c.b16 %v727, %v723
  %v848 = vpack.c.b16 %v728, %v724
  %v849 = vpack.c.b16 %v729, %v725
  %v850 = vpack.c.b16 %v730, %v726
  %v851 = vpack.c.b16 %v735, %v731
  %v852 = vpack.c.b16 %v736, %v732
  %v853 = vpack.c.b16 %v737, %v733
  %v854 = vpack.c.b16 %v738, %v734
  %v855 = vpack.c.b16 %v743, %v739
  %v856 = vpack.c.b16 %v744, %v740
  %v857 = vpack.c.b16 %v745, %v741
  %v858 = vpack.c.b16 %v746, %v742
  %v859 = vpack.c.b16 %v751, %v747
  %v860 = vpack.c.b16 %v752, %v748
  %v861 = vpack.c.b16 %v753, %v749
  %v862 = vpack.c.b16 %v754, %v750
  %v863 = vpack.c.b16 %v759, %v755
  %v864 = vpack.c.b16 %v760, %v756
  %v865 = vpack.c.b16 %v761, %v757
  %v866 = vpack.c.b16 %v762, %v758
  %v867 = vpack.c.b16 %v767, %v763
  %v868 = vpack.c.b16 %v768, %v764
  %v869 = vpack.c.b16 %v769, %v765
  %v870 = vpack.c.b16 %v770, %v766
  %v871 = vpack.c.b16 %v775, %v771
  %v872 = vpack.c.b16 %v776, %v772
  %v873 = vpack.c.b16 %v777, %v773
  %v874 = vpack.c.b16 %v778, %v774
  %v875 = vpack.c.b16 %v783, %v779
  %v876 = vpack.c.b16 %v784, %v780
  %v877 = vpack.c.b16 %v785, %v781
  %v878 = vpack.c.b16 %v786, %v782
  %v879 = vpack.c.b16 %v791, %v787
  %v880 = vpack.c.b16 %v792, %v788
  %v881 = vpack.c.b16 %v793, %v789
  %v882 = vpack.c.b16 %v794, %v790
  %v883 = vpack.c.b16 %v799, %v795
  %v884 = vpack.c.b16 %v800, %v796
  %v885 = vpack.c.b16 %v801, %v797
  %v886 = vpack.c.b16 %v802, %v798
  %v887 = vpack.c.b16 %v807, %v803
  %v888 = vpack.c.b16 %v808, %v804
  %v889 = vpack.c.b16 %v809, %v805
  %v890 = vpack.c.b16 %v810, %v806
  %v891 = vpack.c.b16 %v815, %v811
  %v892 = vpack.c.b16 %v816, %v812
  %v893 = vpack.c.b16 %v817, %v813
  %v894 = vpack.c.b16 %v818, %v814
  %v895 = vpack.c.b16 %v823, %v819
  %v896 = vpack.c.b16 %v824, %v820
  %v897 = vpack.c.b16 %v825, %v821
  %v898 = vpack.c.b16 %v826, %v822
  %v899 = vpack.c.b16 %v831, %v827
  %v900 = vpack.c.b16 %v832, %v828
  %v901 = vpack.c.b16 %v833, %v829
  %v902 = vpack.c.b16 %v834, %v830
  %v903 = vpack.c.b16 %v839, %v835
  %v904 = vpack.c.b16 %v840, %v836
  %v905 = vpack.c.b16 %v841, %v837
  %v906 = vpack.c.b16 %v842, %v838
  %971 = vmatpush.bf16.msra.mxu0 %v871
  %972 = vmatpush.bf16.msra.mxu0 %v867
  %973 = vmatpush.bf16.msra.mxu0 %v863
  %974 = vmatpush.bf16.msra.mxu0 %v859
  %975 = vmatpush.bf16.msra.mxu0 %v855
  %976 = vmatpush.bf16.msra.mxu0 %v851
  %977 = vmatpush.bf16.msra.mxu0 %v847
  %978 = vmatpush.bf16.msra.mxu0 %v843
  %979 = vmatmul.bf16.gmra.mxu0 %v647
  %v980 = vpop.f32.mrf.mxu0
  %v981 = vadd.f32 %v633, %v980
  %v982 = vpop.f32.mrf.mxu0
  %v983 = vadd.f32 %v637, %v982
  %984 = vdwg.mxu0
  %985 = vmatpush.bf16.msra.mxu0 %v903
  %986 = vmatpush.bf16.msra.mxu0 %v899
  %987 = vmatpush.bf16.msra.mxu0 %v895
  %988 = vmatpush.bf16.msra.mxu0 %v891
  %989 = vmatpush.bf16.msra.mxu0 %v887
  %990 = vmatpush.bf16.msra.mxu0 %v883
  %991 = vmatpush.bf16.msra.mxu0 %v879
  %992 = vmatpush.bf16.msra.mxu0 %v875
  %993 = vmatmul.bf16.gmra.mxu0 %v648
  %v994 = vpop.f32.mrf.mxu0
  %v995 = vadd.f32 %v981, %v994
  %v996 = vpop.f32.mrf.mxu0
  %v997 = vadd.f32 %v983, %v996
  %998 = vdwg.mxu0
  %999 = vmatpush.bf16.msra.mxu0 %v872
  %1000 = vmatpush.bf16.msra.mxu0 %v868
  %1001 = vmatpush.bf16.msra.mxu0 %v864
  %1002 = vmatpush.bf16.msra.mxu0 %v860
  %1003 = vmatpush.bf16.msra.mxu0 %v856
  %1004 = vmatpush.bf16.msra.mxu0 %v852
  %1005 = vmatpush.bf16.msra.mxu0 %v848
  %1006 = vmatpush.bf16.msra.mxu0 %v844
  %1007 = vmatmul.bf16.gmra.mxu0 %v647
  %v1008 = vpop.f32.mrf.mxu0
  %v1009 = vadd.f32 %v634, %v1008
  %v1010 = vpop.f32.mrf.mxu0
  %v1011 = vadd.f32 %v638, %v1010
  %1012 = vdwg.mxu0
  %1013 = vmatpush.bf16.msra.mxu0 %v904
  %1014 = vmatpush.bf16.msra.mxu0 %v900
  %1015 = vmatpush.bf16.msra.mxu0 %v896
  %1016 = vmatpush.bf16.msra.mxu0 %v892
  %1017 = vmatpush.bf16.msra.mxu0 %v888
  %1018 = vmatpush.bf16.msra.mxu0 %v884
  %1019 = vmatpush.bf16.msra.mxu0 %v880
  %1020 = vmatpush.bf16.msra.mxu0 %v876
  %1021 = vmatmul.bf16.gmra.mxu0 %v648
  %v1022 = vpop.f32.mrf.mxu0
  %v1023 = vadd.f32 %v1009, %v1022
  %v1024 = vpop.f32.mrf.mxu0
  %v1025 = vadd.f32 %v1011, %v1024
  %1026 = vdwg.mxu0
  %1027 = vmatpush.bf16.msra.mxu0 %v873
  %1028 = vmatpush.bf16.msra.mxu0 %v869
  %1029 = vmatpush.bf16.msra.mxu0 %v865
  %1030 = vmatpush.bf16.msra.mxu0 %v861
  %1031 = vmatpush.bf16.msra.mxu0 %v857
  %1032 = vmatpush.bf16.msra.mxu0 %v853
  %1033 = vmatpush.bf16.msra.mxu0 %v849
  %1034 = vmatpush.bf16.msra.mxu0 %v845
  %1035 = vmatmul.bf16.gmra.mxu0 %v647
  %v1036 = vpop.f32.mrf.mxu0
  %v1037 = vadd.f32 %v635, %v1036
  %v1038 = vpop.f32.mrf.mxu0
  %v1039 = vadd.f32 %v639, %v1038
  %1040 = vdwg.mxu0
  %1041 = vmatpush.bf16.msra.mxu0 %v905
  %1042 = vmatpush.bf16.msra.mxu0 %v901
  %1043 = vmatpush.bf16.msra.mxu0 %v897
  %1044 = vmatpush.bf16.msra.mxu0 %v893
  %1045 = vmatpush.bf16.msra.mxu0 %v889
  %1046 = vmatpush.bf16.msra.mxu0 %v885
  %1047 = vmatpush.bf16.msra.mxu0 %v881
  %1048 = vmatpush.bf16.msra.mxu0 %v877
  %1049 = vmatmul.bf16.gmra.mxu0 %v648
  %v1050 = vpop.f32.mrf.mxu0
  %v1051 = vadd.f32 %v1037, %v1050
  %v1052 = vpop.f32.mrf.mxu0
  %v1053 = vadd.f32 %v1039, %v1052
  %1054 = vdwg.mxu0
  %1055 = vmatpush.bf16.msra.mxu0 %v874
  %1056 = vmatpush.bf16.msra.mxu0 %v870
  %1057 = vmatpush.bf16.msra.mxu0 %v866
  %1058 = vmatpush.bf16.msra.mxu0 %v862
  %1059 = vmatpush.bf16.msra.mxu0 %v858
  %1060 = vmatpush.bf16.msra.mxu0 %v854
  %1061 = vmatpush.bf16.msra.mxu0 %v850
  %1062 = vmatpush.bf16.msra.mxu0 %v846
  %1063 = vmatmul.bf16.gmra.mxu0 %v647
  %v1064 = vpop.f32.mrf.mxu0
  %v1065 = vadd.f32 %v636, %v1064
  %v1066 = vpop.f32.mrf.mxu0
  %v1067 = vadd.f32 %v640, %v1066
  %1068 = vdwg.mxu0
  %1069 = vmatpush.bf16.msra.mxu0 %v906
  %1070 = vmatpush.bf16.msra.mxu0 %v902
  %1071 = vmatpush.bf16.msra.mxu0 %v898
  %1072 = vmatpush.bf16.msra.mxu0 %v894
  %1073 = vmatpush.bf16.msra.mxu0 %v890
  %1074 = vmatpush.bf16.msra.mxu0 %v886
  %1075 = vmatpush.bf16.msra.mxu0 %v882
  %1076 = vmatpush.bf16.msra.mxu0 %v878
  %1077 = vmatmul.bf16.gmra.mxu0 %v648
  %v1078 = vpop.f32.mrf.mxu0
  %v1079 = vadd.f32 %v1065, %v1078
  %v1080 = vpop.f32.mrf.mxu0
  %v1081 = vadd.f32 %v1067, %v1080
  %1082 = vdwg.mxu0
  %v1083 = vld [vmem:[%s5] sm:$0xf]
  %v1085 = vperm.slane %v1083, 0
  %v1086 = vperm.slane %v1083, 1
  %v1087 = vperm.slane %v1083, 2
  %v1088 = vperm.slane %v1083, 3
  %v1093 = vadd.f32 %v995, %v1085
  %v1094 = vadd.f32 %v1023, %v1086
  %v1095 = vadd.f32 %v1051, %v1087
  %v1096 = vadd.f32 %v1079, %v1088
  %v1097 = vadd.f32 %v997, %v1085
  %v1098 = vadd.f32 %v1025, %v1086
  %v1099 = vadd.f32 %v1053, %v1087
  %v1100 = vadd.f32 %v1081, %v1088
  %v1101 = vmax.f32 %v1093, 0.0
  %v1102 = vmax.f32 %v1094, 0.0
  %v1103 = vmax.f32 %v1095, 0.0
  %v1104 = vmax.f32 %v1096, 0.0
  %v1105 = vmax.f32 %v1097, 0.0
  %v1106 = vmax.f32 %v1098, 0.0
  %v1107 = vmax.f32 %v1099, 0.0
  %v1108 = vmax.f32 %v1100, 0.0
  %v1109 = vpack.c.bf16 %v1102, %v1101
  %v1110 = vpack.c.bf16 %v1104, %v1103
  %v1111 = vpack.c.bf16 %v1106, %v1105
  %v1112 = vpack.c.bf16 %v1108, %v1107
  %v1113 = vld [vmem:[%s6] sm:$0xf]
  %v1114 = vld [vmem:[%s6 + $0x4] sm:$0xf]
  %v1115 = vld [vmem:[%s6 + $0x8] sm:$0xf]
  %v1116 = vld [vmem:[%s6 + $0xc] sm:$0xf]
  %v1117 = vld [vmem:[%s6 + $0x10] sm:$0xf]
  %v1118 = vld [vmem:[%s6 + $0x14] sm:$0xf]
  %v1119 = vld [vmem:[%s6 + $0x18] sm:$0xf]
  %v1120 = vld [vmem:[%s6 + $0x1c] sm:$0xf]
  %v1121 = vld [vmem:[%s6 + $0x20] sm:$0xf]
  %v1122 = vld [vmem:[%s6 + $0x24] sm:$0xf]
  %v1123 = vld [vmem:[%s6 + $0x28] sm:$0xf]
  %v1124 = vld [vmem:[%s6 + $0x2c] sm:$0xf]
  %v1125 = vld [vmem:[%s6 + $0x30] sm:$0xf]
  %v1126 = vld [vmem:[%s6 + $0x34] sm:$0xf]
  %v1127 = vld [vmem:[%s6 + $0x38] sm:$0xf]
  %v1128 = vld [vmem:[%s6 + $0x3c] sm:$0xf]
  %v1129 = vld [vmem:[%s6 + $0x40] sm:$0xf]
  %v1130 = vld [vmem:[%s6 + $0x44] sm:$0xf]
  %v1131 = vld [vmem:[%s6 + $0x48] sm:$0xf]
  %v1132 = vld [vmem:[%s6 + $0x4c] sm:$0xf]
  %v1133 = vld [vmem:[%s6 + $0x50] sm:$0xf]
  %v1134 = vld [vmem:[%s6 + $0x54] sm:$0xf]
  %v1135 = vld [vmem:[%s6 + $0x58] sm:$0xf]
  %v1136 = vld [vmem:[%s6 + $0x5c] sm:$0xf]
  %v1137 = vld [vmem:[%s6 + $0x60] sm:$0xf]
  %v1138 = vld [vmem:[%s6 + $0x64] sm:$0xf]
  %v1139 = vld [vmem:[%s6 + $0x68] sm:$0xf]
  %v1140 = vld [vmem:[%s6 + $0x6c] sm:$0xf]
  %v1141 = vld [vmem:[%s6 + $0x70] sm:$0xf]
  %v1142 = vld [vmem:[%s6 + $0x74] sm:$0xf]
  %v1143 = vld [vmem:[%s6 + $0x78] sm:$0xf]
  %v1144 = vld [vmem:[%s6 + $0x7c] sm:$0xf]
  %v1145 = vld [vmem:[%s6 + $0x80] sm:$0xf]
  %v1146 = vld [vmem:[%s6 + $0x84] sm:$0xf]
  %v1147 = vld [vmem:[%s6 + $0x88] sm:$0xf]
  %v1148 = vld [vmem:[%s6 + $0x8c] sm:$0xf]
  %v1149 = vld [vmem:[%s6 + $0x90] sm:$0xf]
  %v1150 = vld [vmem:[%s6 + $0x94] sm:$0xf]
  %v1151 = vld [vmem:[%s6 + $0x98] sm:$0xf]
  %v1152 = vld [vmem:[%s6 + $0x9c] sm:$0xf]
  %v1153 = vld [vmem:[%s6 + $0xa0] sm:$0xf]
  %v1154 = vld [vmem:[%s6 + $0xa4] sm:$0xf]
  %v1155 = vld [vmem:[%s6 + $0xa8] sm:$0xf]
  %v1156 = vld [vmem:[%s6 + $0xac] sm:$0xf]
  %v1157 = vld [vmem:[%s6 + $0xb0] sm:$0xf]
  %v1158 = vld [vmem:[%s6 + $0xb4] sm:$0xf]
  %v1159 = vld [vmem:[%s6 + $0xb8] sm:$0xf]
  %v1160 = vld [vmem:[%s6 + $0xbc] sm:$0xf]
  %v1161 = vld [vmem:[%s6 + $0xc0] sm:$0xf]
  %v1162 = vld [vmem:[%s6 + $0xc4] sm:$0xf]
  %v1163 = vld [vmem:[%s6 + $0xc8] sm:$0xf]
  %v1164 = vld [vmem:[%s6 + $0xcc] sm:$0xf]
  %v1165 = vld [vmem:[%s6 + $0xd0] sm:$0xf]
  %v1166 = vld [vmem:[%s6 + $0xd4] sm:$0xf]
  %v1167 = vld [vmem:[%s6 + $0xd8] sm:$0xf]
  %v1168 = vld [vmem:[%s6 + $0xdc] sm:$0xf]
  %v1169 = vld [vmem:[%s6 + $0xe0] sm:$0xf]
  %v1170 = vld [vmem:[%s6 + $0xe4] sm:$0xf]
  %v1171 = vld [vmem:[%s6 + $0xe8] sm:$0xf]
  %v1172 = vld [vmem:[%s6 + $0xec] sm:$0xf]
  %v1173 = vld [vmem:[%s6 + $0xf0] sm:$0xf]
  %v1174 = vld [vmem:[%s6 + $0xf4] sm:$0xf]
  %v1175 = vld [vmem:[%s6 + $0xf8] sm:$0xf]
  %v1176 = vld [vmem:[%s6 + $0xfc] sm:$0xf]
  %v1177 = vld [vmem:[%s8] sm:$0xf]
  %1179 = vst [vmem:[#allocation1] ss:$9 sm:$0xff] %v1177
  %v1180 = vld [vmem:[#allocation1] sm:$0xff]
  %v1181 = vld [vmem:[#allocation1 + $0x9] sm:$0xff]
  %v1182 = vld [vmem:[#allocation1 + $0x12] sm:$0xff]
  %v1183 = vld [vmem:[#allocation1 + $0x1b] sm:$0xff]
  %v1184 = vpack.i.b16 %v1180, %v1180
  %v1186 = vperm.slane %v1184, 0
  %v1187 = vpack.i.b16 %v1181, %v1181
  %v1189 = vperm.slane %v1187, 0
  %v1190 = vpack.i.b16 %v1182, %v1182
  %v1192 = vperm.slane %v1190, 0
  %v1193 = vpack.i.b16 %v1183, %v1183
  %v1195 = vperm.slane %v1193, 0
  %v1196 = vunpack.c.l.bf16 %v1109
  %v1197 = vunpack.c.h.bf16 %v1109
  %v1198 = vunpack.c.l.bf16 %v1110
  %v1199 = vunpack.c.h.bf16 %v1110
  %v1200 = vunpack.c.l.bf16 %v1111
  %v1201 = vunpack.c.h.bf16 %v1111
  %v1202 = vunpack.c.l.bf16 %v1112
  %v1203 = vunpack.c.h.bf16 %v1112
  %v1204 = vunpack.c.l.bf16 %v1186
  %v1205 = vunpack.c.l.bf16 %v1189
  %v1206 = vunpack.c.l.bf16 %v1192
  %v1207 = vunpack.c.l.bf16 %v1195
  %v1208 = vmul.f32 %v1196, %v1204
  %v1209 = vmul.f32 %v1197, %v1205
  %v1210 = vmul.f32 %v1198, %v1206
  %v1211 = vmul.f32 %v1199, %v1207
  %v1212 = vmul.f32 %v1200, %v1204
  %v1213 = vmul.f32 %v1201, %v1205
  %v1214 = vmul.f32 %v1202, %v1206
  %v1215 = vmul.f32 %v1203, %v1207
  %v1216 = vpack.c.bf16 %v1212, %v1208
  %v1217 = vpack.c.bf16 %v1213, %v1209
  %v1218 = vpack.c.bf16 %v1214, %v1210
  %v1219 = vpack.c.bf16 %v1215, %v1211
  %v1220 = vld [vmem:[%s7] sm:$0xf]
  %v1221 = vld [vmem:[%s7 + $0x4] sm:$0xf]
  %v1222 = vld [vmem:[%s7 + $0x8] sm:$0xf]
  %v1223 = vld [vmem:[%s7 + $0xc] sm:$0xf]
  %v1224 = vld [vmem:[%s7 + $0x10] sm:$0xf]
  %v1225 = vld [vmem:[%s7 + $0x14] sm:$0xf]
  %v1226 = vld [vmem:[%s7 + $0x18] sm:$0xf]
  %v1227 = vld [vmem:[%s7 + $0x1c] sm:$0xf]
  %v1228 = vld [vmem:[%s7 + $0x20] sm:$0xf]
  %v1229 = vld [vmem:[%s7 + $0x24] sm:$0xf]
  %v1230 = vld [vmem:[%s7 + $0x28] sm:$0xf]
  %v1231 = vld [vmem:[%s7 + $0x2c] sm:$0xf]
  %v1232 = vld [vmem:[%s7 + $0x30] sm:$0xf]
  %v1233 = vld [vmem:[%s7 + $0x34] sm:$0xf]
  %v1234 = vld [vmem:[%s7 + $0x38] sm:$0xf]
  %v1235 = vld [vmem:[%s7 + $0x3c] sm:$0xf]
  %v1236 = vld [vmem:[%s7 + $0x40] sm:$0xf]
  %v1237 = vld [vmem:[%s7 + $0x44] sm:$0xf]
  %v1238 = vld [vmem:[%s7 + $0x48] sm:$0xf]
  %v1239 = vld [vmem:[%s7 + $0x4c] sm:$0xf]
  %v1240 = vld [vmem:[%s7 + $0x50] sm:$0xf]
  %v1241 = vld [vmem:[%s7 + $0x54] sm:$0xf]
  %v1242 = vld [vmem:[%s7 + $0x58] sm:$0xf]
  %v1243 = vld [vmem:[%s7 + $0x5c] sm:$0xf]
  %v1244 = vld [vmem:[%s7 + $0x60] sm:$0xf]
  %v1245 = vld [vmem:[%s7 + $0x64] sm:$0xf]
  %v1246 = vld [vmem:[%s7 + $0x68] sm:$0xf]
  %v1247 = vld [vmem:[%s7 + $0x6c] sm:$0xf]
  %v1248 = vld [vmem:[%s7 + $0x70] sm:$0xf]
  %v1249 = vld [vmem:[%s7 + $0x74] sm:$0xf]
  %v1250 = vld [vmem:[%s7 + $0x78] sm:$0xf]
  %v1251 = vld [vmem:[%s7 + $0x7c] sm:$0xf]
  %v1252 = vld [vmem:[%s7 + $0x80] sm:$0xf]
  %v1253 = vld [vmem:[%s7 + $0x84] sm:$0xf]
  %v1254 = vld [vmem:[%s7 + $0x88] sm:$0xf]
  %v1255 = vld [vmem:[%s7 + $0x8c] sm:$0xf]
  %v1256 = vld [vmem:[%s7 + $0x90] sm:$0xf]
  %v1257 = vld [vmem:[%s7 + $0x94] sm:$0xf]
  %v1258 = vld [vmem:[%s7 + $0x98] sm:$0xf]
  %v1259 = vld [vmem:[%s7 + $0x9c] sm:$0xf]
  %v1260 = vld [vmem:[%s7 + $0xa0] sm:$0xf]
  %v1261 = vld [vmem:[%s7 + $0xa4] sm:$0xf]
  %v1262 = vld [vmem:[%s7 + $0xa8] sm:$0xf]
  %v1263 = vld [vmem:[%s7 + $0xac] sm:$0xf]
  %v1264 = vld [vmem:[%s7 + $0xb0] sm:$0xf]
  %v1265 = vld [vmem:[%s7 + $0xb4] sm:$0xf]
  %v1266 = vld [vmem:[%s7 + $0xb8] sm:$0xf]
  %v1267 = vld [vmem:[%s7 + $0xbc] sm:$0xf]
  %v1268 = vld [vmem:[%s7 + $0xc0] sm:$0xf]
  %v1269 = vld [vmem:[%s7 + $0xc4] sm:$0xf]
  %v1270 = vld [vmem:[%s7 + $0xc8] sm:$0xf]
  %v1271 = vld [vmem:[%s7 + $0xcc] sm:$0xf]
  %v1272 = vld [vmem:[%s7 + $0xd0] sm:$0xf]
  %v1273 = vld [vmem:[%s7 + $0xd4] sm:$0xf]
  %v1274 = vld [vmem:[%s7 + $0xd8] sm:$0xf]
  %v1275 = vld [vmem:[%s7 + $0xdc] sm:$0xf]
  %v1276 = vld [vmem:[%s7 + $0xe0] sm:$0xf]
  %v1277 = vld [vmem:[%s7 + $0xe4] sm:$0xf]
  %v1278 = vld [vmem:[%s7 + $0xe8] sm:$0xf]
  %v1279 = vld [vmem:[%s7 + $0xec] sm:$0xf]
  %v1280 = vld [vmem:[%s7 + $0xf0] sm:$0xf]
  %v1281 = vld [vmem:[%s7 + $0xf4] sm:$0xf]
  %v1282 = vld [vmem:[%s7 + $0xf8] sm:$0xf]
  %v1283 = vld [vmem:[%s7 + $0xfc] sm:$0xf]
  %v1348 = vunpack.c.l.b16 %v1220
  %v1349 = vunpack.c.l.b16 %v1221
  %v1350 = vunpack.c.l.b16 %v1222
  %v1351 = vunpack.c.l.b16 %v1223
  %v1352 = vunpack.c.l.b16 %v1224
  %v1353 = vunpack.c.l.b16 %v1225
  %v1354 = vunpack.c.l.b16 %v1226
  %v1355 = vunpack.c.l.b16 %v1227
  %v1356 = vunpack.c.l.b16 %v1228
  %v1357 = vunpack.c.l.b16 %v1229
  %v1358 = vunpack.c.l.b16 %v1230
  %v1359 = vunpack.c.l.b16 %v1231
  %v1360 = vunpack.c.l.b16 %v1232
  %v1361 = vunpack.c.l.b16 %v1233
  %v1362 = vunpack.c.l.b16 %v1234
  %v1363 = vunpack.c.l.b16 %v1235
  %v1364 = vunpack.c.l.b16 %v1236
  %v1365 = vunpack.c.l.b16 %v1237
  %v1366 = vunpack.c.l.b16 %v1238
  %v1367 = vunpack.c.l.b16 %v1239
  %v1368 = vunpack.c.l.b16 %v1240
  %v1369 = vunpack.c.l.b16 %v1241
  %v1370 = vunpack.c.l.b16 %v1242
  %v1371 = vunpack.c.l.b16 %v1243
  %v1372 = vunpack.c.l.b16 %v1244
  %v1373 = vunpack.c.l.b16 %v1245
  %v1374 = vunpack.c.l.b16 %v1246
  %v1375 = vunpack.c.l.b16 %v1247
  %v1376 = vunpack.c.l.b16 %v1248
  %v1377 = vunpack.c.l.b16 %v1249
  %v1378 = vunpack.c.l.b16 %v1250
  %v1379 = vunpack.c.l.b16 %v1251
  %v1380 = vunpack.c.l.b16 %v1252
  %v1381 = vunpack.c.l.b16 %v1253
  %v1382 = vunpack.c.l.b16 %v1254
  %v1383 = vunpack.c.l.b16 %v1255
  %v1384 = vunpack.c.l.b16 %v1256
  %v1385 = vunpack.c.l.b16 %v1257
  %v1386 = vunpack.c.l.b16 %v1258
  %v1387 = vunpack.c.l.b16 %v1259
  %v1388 = vunpack.c.l.b16 %v1260
  %v1389 = vunpack.c.l.b16 %v1261
  %v1390 = vunpack.c.l.b16 %v1262
  %v1391 = vunpack.c.l.b16 %v1263
  %v1392 = vunpack.c.l.b16 %v1264
  %v1393 = vunpack.c.l.b16 %v1265
  %v1394 = vunpack.c.l.b16 %v1266
  %v1395 = vunpack.c.l.b16 %v1267
  %v1396 = vunpack.c.l.b16 %v1268
  %v1397 = vunpack.c.l.b16 %v1269
  %v1398 = vunpack.c.l.b16 %v1270
  %v1399 = vunpack.c.l.b16 %v1271
  %v1400 = vunpack.c.l.b16 %v1272
  %v1401 = vunpack.c.l.b16 %v1273
  %v1402 = vunpack.c.l.b16 %v1274
  %v1403 = vunpack.c.l.b16 %v1275
  %v1404 = vunpack.c.l.b16 %v1276
  %v1405 = vunpack.c.l.b16 %v1277
  %v1406 = vunpack.c.l.b16 %v1278
  %v1407 = vunpack.c.l.b16 %v1279
  %v1408 = vunpack.c.l.b16 %v1280
  %v1409 = vunpack.c.l.b16 %v1281
  %v1410 = vunpack.c.l.b16 %v1282
  %v1411 = vunpack.c.l.b16 %v1283
  %v1412 = vpack.c.b16 %v1349, %v1348
  %v1413 = vpack.c.b16 %v1351, %v1350
  %v1414 = vpack.c.b16 %v1353, %v1352
  %v1415 = vpack.c.b16 %v1355, %v1354
  %v1416 = vpack.c.b16 %v1357, %v1356
  %v1417 = vpack.c.b16 %v1359, %v1358
  %v1418 = vpack.c.b16 %v1361, %v1360
  %v1419 = vpack.c.b16 %v1363, %v1362
  %v1420 = vpack.c.b16 %v1365, %v1364
  %v1421 = vpack.c.b16 %v1367, %v1366
  %v1422 = vpack.c.b16 %v1369, %v1368
  %v1423 = vpack.c.b16 %v1371, %v1370
  %v1424 = vpack.c.b16 %v1373, %v1372
  %v1425 = vpack.c.b16 %v1375, %v1374
  %v1426 = vpack.c.b16 %v1377, %v1376
  %v1427 = vpack.c.b16 %v1379, %v1378
  %v1428 = vpack.c.b16 %v1381, %v1380
  %v1429 = vpack.c.b16 %v1383, %v1382
  %v1430 = vpack.c.b16 %v1385, %v1384
  %v1431 = vpack.c.b16 %v1387, %v1386
  %v1432 = vpack.c.b16 %v1389, %v1388
  %v1433 = vpack.c.b16 %v1391, %v1390
  %v1434 = vpack.c.b16 %v1393, %v1392
  %v1435 = vpack.c.b16 %v1395, %v1394
  %v1436 = vpack.c.b16 %v1397, %v1396
  %v1437 = vpack.c.b16 %v1399, %v1398
  %v1438 = vpack.c.b16 %v1401, %v1400
  %v1439 = vpack.c.b16 %v1403, %v1402
  %v1440 = vpack.c.b16 %v1405, %v1404
  %v1441 = vpack.c.b16 %v1407, %v1406
  %v1442 = vpack.c.b16 %v1409, %v1408
  %v1443 = vpack.c.b16 %v1411, %v1410
  %1476 = vmatpush.bf16.msra.mxu0 %v1419
  %1477 = vmatpush.bf16.msra.mxu0 %v1418
  %1478 = vmatpush.bf16.msra.mxu0 %v1417
  %1479 = vmatpush.bf16.msra.mxu0 %v1416
  %1480 = vmatpush.bf16.msra.mxu0 %v1415
  %1481 = vmatpush.bf16.msra.mxu0 %v1414
  %1482 = vmatpush.bf16.msra.mxu0 %v1413
  %1483 = vmatpush.bf16.msra.mxu0 %v1412
  %1484 = vmatmul.bf16.gmra.mxu0 %v1216
  %v1485 = vpop.f32.mrf.mxu0
  %v1486 = vadd.f32 0.0, %v1485
  %v1487 = vpop.f32.mrf.mxu0
  %v1488 = vadd.f32 0.0, %v1487
  %1489 = vdwg.mxu0
  %1490 = vmatpush.bf16.msra.mxu0 %v1427
  %1491 = vmatpush.bf16.msra.mxu0 %v1426
  %1492 = vmatpush.bf16.msra.mxu0 %v1425
  %1493 = vmatpush.bf16.msra.mxu0 %v1424
  %1494 = vmatpush.bf16.msra.mxu0 %v1423
  %1495 = vmatpush.bf16.msra.mxu0 %v1422
  %1496 = vmatpush.bf16.msra.mxu0 %v1421
  %1497 = vmatpush.bf16.msra.mxu0 %v1420
  %1498 = vmatmul.bf16.gmra.mxu0 %v1217
  %v1499 = vpop.f32.mrf.mxu0
  %v1500 = vadd.f32 %v1486, %v1499
  %v1501 = vpop.f32.mrf.mxu0
  %v1502 = vadd.f32 %v1488, %v1501
  %1503 = vdwg.mxu0
  %1504 = vmatpush.bf16.msra.mxu0 %v1435
  %1505 = vmatpush.bf16.msra.mxu0 %v1434
  %1506 = vmatpush.bf16.msra.mxu0 %v1433
  %1507 = vmatpush.bf16.msra.mxu0 %v1432
  %1508 = vmatpush.bf16.msra.mxu0 %v1431
  %1509 = vmatpush.bf16.msra.mxu0 %v1430
  %1510 = vmatpush.bf16.msra.mxu0 %v1429
  %1511 = vmatpush.bf16.msra.mxu0 %v1428
  %1512 = vmatmul.bf16.gmra.mxu0 %v1218
  %v1513 = vpop.f32.mrf.mxu0
  %v1514 = vadd.f32 %v1500, %v1513
  %v1515 = vpop.f32.mrf.mxu0
  %v1516 = vadd.f32 %v1502, %v1515
  %1517 = vdwg.mxu0
  %1518 = vmatpush.bf16.msra.mxu0 %v1443
  %1519 = vmatpush.bf16.msra.mxu0 %v1442
  %1520 = vmatpush.bf16.msra.mxu0 %v1441
  %1521 = vmatpush.bf16.msra.mxu0 %v1440
  %1522 = vmatpush.bf16.msra.mxu0 %v1439
  %1523 = vmatpush.bf16.msra.mxu0 %v1438
  %1524 = vmatpush.bf16.msra.mxu0 %v1437
  %1525 = vmatpush.bf16.msra.mxu0 %v1436
  %1526 = vmatmul.bf16.gmra.mxu0 %v1219
  %v1527 = vpop.f32.mrf.mxu0
  %v1528 = vadd.f32 %v1514, %v1527
  %v1529 = vpop.f32.mrf.mxu0
  %v1530 = vadd.f32 %v1516, %v1529
  %1531 = vdwg.mxu0
  %v1532 = vld [vmem:[%s9] sm:$0x1]
  %v1534 = vperm.slane %v1532, 0
  %v1536 = vmul.f32 %v1528, %v1534
  %v1537 = vmul.f32 %v1530, %v1534
  %v1542 = vunpack.c.l.b16 %v1109
  %v1543 = vunpack.c.h.b16 %v1109
  %v1544 = vunpack.c.l.b16 %v1110
  %v1545 = vunpack.c.h.b16 %v1110
  %v1546 = vunpack.c.l.b16 %v1111
  %v1547 = vunpack.c.h.b16 %v1111
  %v1548 = vunpack.c.l.b16 %v1112
  %v1549 = vunpack.c.h.b16 %v1112
  %v1550 = vpack.c.b16 %v1546, %v1542
  %v1551 = vpack.c.b16 %v1547, %v1543
  %v1552 = vpack.c.b16 %v1548, %v1544
  %v1553 = vpack.c.b16 %v1549, %v1545
  %v1622 = vunpack.c.l.b16 %v1113
  %v1623 = vunpack.c.l.b16 %v1114
  %v1624 = vunpack.c.l.b16 %v1115
  %v1625 = vunpack.c.l.b16 %v1116
  %v1626 = vunpack.c.l.b16 %v1117
  %v1627 = vunpack.c.l.b16 %v1118
  %v1628 = vunpack.c.l.b16 %v1119
  %v1629 = vunpack.c.l.b16 %v1120
  %v1630 = vunpack.c.l.b16 %v1121
  %v1631 = vunpack.c.l.b16 %v1122
  %v1632 = vunpack.c.l.b16 %v1123
  %v1633 = vunpack.c.l.b16 %v1124
  %v1634 = vunpack.c.l.b16 %v1125
  %v1635 = vunpack.c.l.b16 %v1126
  %v1636 = vunpack.c.l.b16 %v1127
  %v1637 = vunpack.c.l.b16 %v1128
  %v1638 = vunpack.c.l.b16 %v1129
  %v1639 = vunpack.c.l.b16 %v1130
  %v1640 = vunpack.c.l.b16 %v1131
  %v1641 = vunpack.c.l.b16 %v1132
  %v1642 = vunpack.c.l.b16 %v1133
  %v1643 = vunpack.c.l.b16 %v1134
  %v1644 = vunpack.c.l.b16 %v1135
  %v1645 = vunpack.c.l.b16 %v1136
  %v1646 = vunpack.c.l.b16 %v1137
  %v1647 = vunpack.c.l.b16 %v1138
  %v1648 = vunpack.c.l.b16 %v1139
  %v1649 = vunpack.c.l.b16 %v1140
  %v1650 = vunpack.c.l.b16 %v1141
  %v1651 = vunpack.c.l.b16 %v1142
  %v1652 = vunpack.c.l.b16 %v1143
  %v1653 = vunpack.c.l.b16 %v1144
  %v1654 = vunpack.c.l.b16 %v1145
  %v1655 = vunpack.c.l.b16 %v1146
  %v1656 = vunpack.c.l.b16 %v1147
  %v1657 = vunpack.c.l.b16 %v1148
  %v1658 = vunpack.c.l.b16 %v1149
  %v1659 = vunpack.c.l.b16 %v1150
  %v1660 = vunpack.c.l.b16 %v1151
  %v1661 = vunpack.c.l.b16 %v1152
  %v1662 = vunpack.c.l.b16 %v1153
  %v1663 = vunpack.c.l.b16 %v1154
  %v1664 = vunpack.c.l.b16 %v1155
  %v1665 = vunpack.c.l.b16 %v1156
  %v1666 = vunpack.c.l.b16 %v1157
  %v1667 = vunpack.c.l.b16 %v1158
  %v1668 = vunpack.c.l.b16 %v1159
  %v1669 = vunpack.c.l.b16 %v1160
  %v1670 = vunpack.c.l.b16 %v1161
  %v1671 = vunpack.c.l.b16 %v1162
  %v1672 = vunpack.c.l.b16 %v1163
  %v1673 = vunpack.c.l.b16 %v1164
  %v1674 = vunpack.c.l.b16 %v1165
  %v1675 = vunpack.c.l.b16 %v1166
  %v1676 = vunpack.c.l.b16 %v1167
  %v1677 = vunpack.c.l.b16 %v1168
  %v1678 = vunpack.c.l.b16 %v1169
  %v1679 = vunpack.c.l.b16 %v1170
  %v1680 = vunpack.c.l.b16 %v1171
  %v1681 = vunpack.c.l.b16 %v1172
  %v1682 = vunpack.c.l.b16 %v1173
  %v1683 = vunpack.c.l.b16 %v1174
  %v1684 = vunpack.c.l.b16 %v1175
  %v1685 = vunpack.c.l.b16 %v1176
  %v1686 = vpack.c.b16 %v1623, %v1622
  %v1687 = vpack.c.b16 %v1625, %v1624
  %v1688 = vpack.c.b16 %v1627, %v1626
  %v1689 = vpack.c.b16 %v1629, %v1628
  %v1690 = vpack.c.b16 %v1631, %v1630
  %v1691 = vpack.c.b16 %v1633, %v1632
  %v1692 = vpack.c.b16 %v1635, %v1634
  %v1693 = vpack.c.b16 %v1637, %v1636
  %v1694 = vpack.c.b16 %v1639, %v1638
  %v1695 = vpack.c.b16 %v1641, %v1640
  %v1696 = vpack.c.b16 %v1643, %v1642
  %v1697 = vpack.c.b16 %v1645, %v1644
  %v1698 = vpack.c.b16 %v1647, %v1646
  %v1699 = vpack.c.b16 %v1649, %v1648
  %v1700 = vpack.c.b16 %v1651, %v1650
  %v1701 = vpack.c.b16 %v1653, %v1652
  %v1702 = vpack.c.b16 %v1655, %v1654
  %v1703 = vpack.c.b16 %v1657, %v1656
  %v1704 = vpack.c.b16 %v1659, %v1658
  %v1705 = vpack.c.b16 %v1661, %v1660
  %v1706 = vpack.c.b16 %v1663, %v1662
  %v1707 = vpack.c.b16 %v1665, %v1664
  %v1708 = vpack.c.b16 %v1667, %v1666
  %v1709 = vpack.c.b16 %v1669, %v1668
  %v1710 = vpack.c.b16 %v1671, %v1670
  %v1711 = vpack.c.b16 %v1673, %v1672
  %v1712 = vpack.c.b16 %v1675, %v1674
  %v1713 = vpack.c.b16 %v1677, %v1676
  %v1714 = vpack.c.b16 %v1679, %v1678
  %v1715 = vpack.c.b16 %v1681, %v1680
  %v1716 = vpack.c.b16 %v1683, %v1682
  %v1717 = vpack.c.b16 %v1685, %v1684
  %1750 = vmatpush.bf16.msra.mxu0 %v1693
  %1751 = vmatpush.bf16.msra.mxu0 %v1692
  %1752 = vmatpush.bf16.msra.mxu0 %v1691
  %1753 = vmatpush.bf16.msra.mxu0 %v1690
  %1754 = vmatpush.bf16.msra.mxu0 %v1689
  %1755 = vmatpush.bf16.msra.mxu0 %v1688
  %1756 = vmatpush.bf16.msra.mxu0 %v1687
  %1757 = vmatpush.bf16.msra.mxu0 %v1686
  %1758 = vmatmul.bf16.gmra.mxu0 %v1550
  %v1759 = vpop.f32.mrf.mxu0
  %v1760 = vadd.f32 %v1536, %v1759
  %v1761 = vpop.f32.mrf.mxu0
  %v1762 = vadd.f32 %v1537, %v1761
  %1763 = vdwg.mxu0
  %1764 = vmatpush.bf16.msra.mxu0 %v1701
  %1765 = vmatpush.bf16.msra.mxu0 %v1700
  %1766 = vmatpush.bf16.msra.mxu0 %v1699
  %1767 = vmatpush.bf16.msra.mxu0 %v1698
  %1768 = vmatpush.bf16.msra.mxu0 %v1697
  %1769 = vmatpush.bf16.msra.mxu0 %v1696
  %1770 = vmatpush.bf16.msra.mxu0 %v1695
  %1771 = vmatpush.bf16.msra.mxu0 %v1694
  %1772 = vmatmul.bf16.gmra.mxu0 %v1551
  %v1773 = vpop.f32.mrf.mxu0
  %v1774 = vadd.f32 %v1760, %v1773
  %v1775 = vpop.f32.mrf.mxu0
  %v1776 = vadd.f32 %v1762, %v1775
  %1777 = vdwg.mxu0
  %1778 = vmatpush.bf16.msra.mxu0 %v1709
  %1779 = vmatpush.bf16.msra.mxu0 %v1708
  %1780 = vmatpush.bf16.msra.mxu0 %v1707
  %1781 = vmatpush.bf16.msra.mxu0 %v1706
  %1782 = vmatpush.bf16.msra.mxu0 %v1705
  %1783 = vmatpush.bf16.msra.mxu0 %v1704
  %1784 = vmatpush.bf16.msra.mxu0 %v1703
  %1785 = vmatpush.bf16.msra.mxu0 %v1702
  %1786 = vmatmul.bf16.gmra.mxu0 %v1552
  %v1787 = vpop.f32.mrf.mxu0
  %v1788 = vadd.f32 %v1774, %v1787
  %v1789 = vpop.f32.mrf.mxu0
  %v1790 = vadd.f32 %v1776, %v1789
  %1791 = vdwg.mxu0
  %1792 = vmatpush.bf16.msra.mxu0 %v1717
  %1793 = vmatpush.bf16.msra.mxu0 %v1716
  %1794 = vmatpush.bf16.msra.mxu0 %v1715
  %1795 = vmatpush.bf16.msra.mxu0 %v1714
  %1796 = vmatpush.bf16.msra.mxu0 %v1713
  %1797 = vmatpush.bf16.msra.mxu0 %v1712
  %1798 = vmatpush.bf16.msra.mxu0 %v1711
  %1799 = vmatpush.bf16.msra.mxu0 %v1710
  %1800 = vmatmul.bf16.gmra.mxu0 %v1553
  %v1801 = vpop.f32.mrf.mxu0
  %v1802 = vadd.f32 %v1788, %v1801
  %v1803 = vpop.f32.mrf.mxu0
  %v1804 = vadd.f32 %v1790, %v1803
  %1805 = vdwg.mxu0
  %v1806 = vld [vmem:[%s10] sm:$0x1]
  %v1808 = vperm.slane %v1806, 0
  %v1810 = vadd.f32 %v1802, %v1808
  %v1811 = vadd.f32 %v1804, %v1808
  %1812 = vst [vmem:[%s11] sm:$0xff] %v1810
  %1813 = vst [vmem:[%s11 + $0x8] sm:$0xff] %v1811
  // Predicated region
  $region46: #{dqn_forward.9} parent=0 // pred_check
    _
  $region47: #{dqn_forward.9} parent=0 // pred_check_branch
    %1815 = sbr.rel (0) target = $region49
  $region48: #{dqn_forward.9} parent=0 // pred_region
    _
  $region49: #{dqn_forward.9} parent=0 // pred_fallthru
    _
  // Predicated region
  $region50: #{dqn_forward.9} parent=0 // pred_check
    _
  $region51: #{dqn_forward.9} parent=0 // pred_check_branch
    %1817 = sbr.rel (0) target = $region53
  $region52: #{dqn_forward.9} parent=0 // pred_region
    _
  $region53: #{dqn_forward.9} parent=0 // pred_fallthru
    _

</llo_original>
